<compile_context>
chip_gen: v6e
topology: v6e:2x2x1
jax: 0.10.0
libtpu: 0.0.40
codegen_flags: <defaults>
</compile_context>

<pallas_src>
import jax
import jax.numpy as jnp
from jax.experimental import pallas as pl
from jax.experimental.pallas import tpu as pltpu


# ---------------------------------------------------------------------------
# Fused kernel: conv-stem encoder + mean pool + projection + cosine/softmax/argmax
# ---------------------------------------------------------------------------
def _make_fused_kernel(tile_lo, true_lo, n_classes, needs_mask):
    inv_lo = 1.0 / float(true_lo)

    def kernel(patches_ref, wc_ref, bc_ref, wp_ref, bp_ref, ct_ref,
               ecg_ref, probs_ref, pred_ref, acc_ref):
        l = pl.program_id(1)
        nl = pl.num_programs(1)

        @pl.when(l == 0)
        def _init():
            acc_ref[...] = jnp.zeros_like(acc_ref)

        # conv-as-matmul on one (TL, KCp) tile of im2col patches: bf16 inputs,
        # f32 accumulation on the MXU.
        x = patches_ref[0]                                    # (TL, KCp) bf16
        h = jnp.dot(x, wc_ref[...], preferred_element_type=jnp.float32)
        h = jnp.maximum(h + bc_ref[...], 0.0)                 # bias + ReLU (f32)

        if needs_mask:
            # Lo was padded to a tile multiple with zero patches; those rows
            # produce ReLU(bias) != 0, so mask them out of the pooled sum.
            row = jax.lax.broadcasted_iota(jnp.int32, h.shape, 0) + l * tile_lo
            h = jnp.where(row < true_lo, h, 0.0)

        # global-average-pool partial sum as a cross-sublane reduction (XLU/VPU
        # has slack when the kernel is MXU/DMA bound) into a VMEM f32 scratch,
        # accumulated across the "arbitrary" Lo axis.
        acc_ref[...] += jnp.sum(h, axis=0, keepdims=True)

        @pl.when(l == nl - 1)
        def _finalize():
            pooled = acc_ref[...] * inv_lo                    # (1, Coutp), true-Lo mean
            ecg = jnp.dot(pooled.astype(jnp.bfloat16), wp_ref[...],
                          preferred_element_type=jnp.float32) + bp_ref[...]
            ecg_ref[0] = ecg                                  # (1, Dp) f32

            # cosine similarity vs frozen, pre-normalized class text reps
            en2 = jnp.sum(ecg * ecg, axis=-1, keepdims=True)
            inv_en = jax.lax.rsqrt(jnp.maximum(en2, 1e-16))   # 1 / max(||e||, 1e-8)
            sim = jnp.dot(ecg.astype(jnp.bfloat16), ct_ref[...],
                          preferred_element_type=jnp.float32) * inv_en  # (1, Cp)

            col = jax.lax.broadcasted_iota(jnp.int32, sim.shape, 1)
            sim_m = jnp.where(col < n_classes, sim, jnp.float32(-jnp.inf))

            # exact softmax over the real classes (padded lanes are exactly 0);
            # epilogue runs once per batch, so the exact divide is free.
            mx = jnp.max(sim_m, axis=-1, keepdims=True)
            ex = jnp.exp(sim_m - mx)
            denom = jnp.sum(ex, axis=-1, keepdims=True)
            probs_ref[0] = ex / denom

            # argmax on PRE-softmax sims (same result, no exp/divide in the
            # comparison path), first-occurrence tie-break; single int32 store.
            cand = jnp.where(sim_m >= mx, col, jnp.int32(2 ** 30))
            pred_ref[0] = jnp.min(cand, axis=-1, keepdims=True).astype(jnp.int32)

    return kernel


def mets_fused_forward(patches, wc, bc, wp, bp, ct_norm, *,
                       true_lo, tile_lo, n_classes):
    """One pallas_call: ECG encoder stem + similarity classification."""
    B, lo_pad, kcp = patches.shape
    coutp = wc.shape[1]
    dp = wp.shape[1]
    cp = ct_norm.shape[1]
    assert lo_pad % tile_lo == 0, "padded Lo must be a multiple of the Lo tile"
    nl = lo_pad // tile_lo
    needs_mask = (lo_pad != true_lo)

    kernel = _make_fused_kernel(tile_lo, true_lo, n_classes, needs_mask)

    # Explicit VMEM budget so large Lo tiles keep compiling on every generation
    # (v5e scoped default 16 MiB, v7x physical 64 MiB). Patches are multi-buffered,
    # constants double-buffered; cap below any chip's physical VMEM.
    est = (3 * tile_lo * kcp * 2
           + 2 * (kcp * coutp * 2 + coutp * 4 + coutp * dp * 2 + dp * 4 + dp * cp * 2)
           + 4 * (dp * 4 + cp * 4 + 4)
           + coutp * 4)
    vmem_limit = int(min(max(4 * est, 32 * 1024 * 1024), 48 * 1024 * 1024))

    grid_spec = pltpu.PrefetchScalarGridSpec(
        num_scalar_prefetch=0,
        grid=(B, nl),
        in_specs=[
            pl.BlockSpec((1, tile_lo, kcp), lambda b, l: (b, l, 0)),   # patches bf16
            pl.BlockSpec((kcp, coutp), lambda b, l: (0, 0)),           # conv W bf16
            pl.BlockSpec((1, coutp), lambda b, l: (0, 0)),             # conv b f32
            pl.BlockSpec((coutp, dp), lambda b, l: (0, 0)),            # proj W bf16
            pl.BlockSpec((1, dp), lambda b, l: (0, 0)),                # proj b f32
            pl.BlockSpec((dp, cp), lambda b, l: (0, 0)),               # class reps^T bf16
        ],
        out_specs=(
            pl.BlockSpec((1, 1, dp), lambda b, l: (b, 0, 0)),          # ecg_rep
            pl.BlockSpec((1, 1, cp), lambda b, l: (b, 0, 0)),          # probs
            pl.BlockSpec((1, 1, 1), lambda b, l: (b, 0, 0)),           # pred (1 int32)
        ),
        scratch_shapes=[pltpu.VMEM((1, coutp), jnp.float32)],          # pooled acc
    )

    ecg3, probs3, pred3 = pl.pallas_call(
        kernel,
        out_shape=(
            jax.ShapeDtypeStruct((B, 1, dp), jnp.float32),
            jax.ShapeDtypeStruct((B, 1, cp), jnp.float32),
            jax.ShapeDtypeStruct((B, 1, 1), jnp.int32),
        ),
        grid_spec=grid_spec,
        compiler_params=pltpu.CompilerParams(
            dimension_semantics=("parallel", "arbitrary"),   # B shards across cores
            vmem_limit_bytes=vmem_limit),
    )(patches, wc, bc, wp, bp, ct_norm)

    ecg_rep = ecg3[:, 0, :]
    probs = probs3[:, 0, :n_classes]
    pred = pred3[:, 0, 0]
    return pred, probs, ecg_rep


# ---------------------------------------------------------------------------
# Glue: im2col for the 1-D convolution (NCW input, PyTorch semantics), bf16 +
# zero-padded reduce dim (128 multiple) and Lo padded to a tile multiple.
# ---------------------------------------------------------------------------
def conv1d_im2col(x, kernel_size, stride, padding, kc_padded, lo_multiple):
    B, Cin, L = x.shape
    xp = jnp.pad(x, ((0, 0), (0, 0), (padding, padding)))
    Lo = (L + 2 * padding - kernel_size) // stride + 1
    idx = jnp.arange(Lo)[:, None] * stride + jnp.arange(kernel_size)[None, :]
    patches = xp[:, :, idx]                          # (B, Cin, Lo, K)
    patches = jnp.transpose(patches, (0, 2, 3, 1))   # (B, Lo, K, Cin)
    patches = patches.reshape(B, Lo, kernel_size * Cin)
    kc = kernel_size * Cin
    lo_pad = ((Lo + lo_multiple - 1) // lo_multiple) * lo_multiple
    patches = jnp.pad(patches, ((0, 0), (0, lo_pad - Lo), (0, kc_padded - kc)))
    return patches.astype(jnp.bfloat16), Lo


# ---------------------------------------------------------------------------
# METS test-stage forward: ecg -> ecg_encoder -> similarity_classify -> pred
# ---------------------------------------------------------------------------
def mets_forward_test(ecg_data, params, class_text_rep_normT, n_classes,
                      kernel_size=7, stride=2, padding=3, tile_lo=256):
    kcp = params["conv_w_flat"].shape[0]
    B, Cin, L = ecg_data.shape
    lo = (L + 2 * padding - kernel_size) // stride + 1
    # Big Lo tiles amortize the ~0.35us per-grid-step overhead and fill the MXU
    # M dimension; clamp for short records (stay a multiple of 8 sublanes).
    tile_lo = max(8, min(tile_lo, ((lo + 7) // 8) * 8))
    patches, lo = conv1d_im2col(ecg_data, kernel_size, stride, padding, kcp, tile_lo)
    return mets_fused_forward(
        patches, params["conv_w_flat"], params["conv_b"],
        params["proj_w"], params["proj_b"], class_text_rep_normT,
        true_lo=lo, tile_lo=tile_lo, n_classes=n_classes)


if __name__ == "__main__":
    # small, shape-consistent synthetic configuration (lane-dense 128 multiples)
    B, Cin, L = 2, 16, 1000         # ECG: batch=2, 16 leads, 1000 samples
    D = 128                         # embedding-dim stand-in (multiple of 128)
    COUT = 128                      # conv stem channels (multiple of 128)
    K, STRIDE, PAD = 7, 2, 3
    NUM_CLASSES = 5
    C_PAD = 128                     # classes padded to one full lane register
    TILE_LO = 256                   # Lo tile (Lo=500 -> padded 512 -> 2 steps)

    key = jax.random.PRNGKey(0)
    k0, k1, k2, k3, k4, k5 = jax.random.split(key, 6)

    ecg = jax.random.normal(k0, (B, Cin, L), jnp.float32)

    # deterministic parameter init (PyTorch conv weight layout (Cout, Cin, K))
    conv_w = 0.1 * jax.random.normal(k1, (COUT, Cin, K), jnp.float32)
    conv_b = 0.1 * jax.random.normal(k2, (COUT,), jnp.float32)
    proj_w = 0.1 * jax.random.normal(k3, (COUT, D), jnp.float32)
    proj_b = 0.1 * jax.random.normal(k4, (D,), jnp.float32)

    # flatten conv weight to im2col patch ordering (k, cin) -> rows, pad reduce
    # dim 112 -> 128 with zero rows; all frozen MXU operands cast to bf16.
    KC = K * Cin
    KCP = ((KC + 127) // 128) * 128
    conv_w_flat = jnp.transpose(conv_w, (2, 1, 0)).reshape(KC, COUT)
    conv_w_flat = jnp.pad(conv_w_flat, ((0, KCP - KC), (0, 0))).astype(jnp.bfloat16)

    params = {
        "conv_w_flat": conv_w_flat,                 # (KCP, COUT) bf16
        "conv_b": conv_b.reshape(1, COUT),          # f32
        "proj_w": proj_w.astype(jnp.bfloat16),      # (COUT, D) bf16
        "proj_b": proj_b.reshape(1, D),             # f32
    }

    # synthetic frozen-BERT class text representations, pre-L2-normalized once
    # on the host (they are frozen), transposed, zero-padded to 128 lanes, bf16.
    class_text_rep = jax.random.normal(k5, (NUM_CLASSES, D), jnp.float32)
    cls_norm = jnp.sqrt(jnp.sum(class_text_rep * class_text_rep, axis=-1,
                                keepdims=True))
    cls_unit = class_text_rep / jnp.maximum(cls_norm, 1e-8)       # (C, D)
    class_rep_normT = jnp.pad(cls_unit.T,
                              ((0, 0), (0, C_PAD - NUM_CLASSES))
                              ).astype(jnp.bfloat16)              # (D, 128)

    pred, probs, ecg_rep = mets_forward_test(
        ecg, params, class_rep_normT, NUM_CLASSES,
        kernel_size=K, stride=STRIDE, padding=PAD, tile_lo=TILE_LO)
    jax.block_until_ready((pred, probs, ecg_rep))

    # pure-JAX f32 reference of the same stand-in forward pass
    xp = jnp.pad(ecg, ((0, 0), (0, 0), (PAD, PAD)))
    Lo = (L + 2 * PAD - K) // STRIDE + 1
    idx = jnp.arange(Lo)[:, None] * STRIDE + jnp.arange(K)[None, :]
    ref_patches = jnp.transpose(xp[:, :, idx], (0, 2, 3, 1)).reshape(B, Lo, KC)
    ref_w = jnp.transpose(conv_w, (2, 1, 0)).reshape(KC, COUT)
    ref_h = jnp.maximum(ref_patches @ ref_w + conv_b[None, None, :], 0.0)
    ref_pool = ref_h.mean(axis=1)
    ref_e = ref_pool @ proj_w + proj_b[None, :]
    ref_sim = (ref_e @ cls_unit.T) / jnp.maximum(
        jnp.linalg.norm(ref_e, axis=-1, keepdims=True), 1e-8)
    ref_probs = jax.nn.softmax(ref_sim, axis=-1)

    assert pred.shape == (B,) and pred.dtype == jnp.int32
    assert probs.shape == (B, NUM_CLASSES)
    assert ecg_rep.shape == (B, D)
    assert bool(jnp.all(jnp.isfinite(probs)))
    assert bool(jnp.all((pred >= 0) & (pred < NUM_CLASSES)))
    assert bool(jnp.all(jnp.abs(jnp.sum(probs, axis=-1) - 1.0) < 1e-3))
    assert bool(jnp.allclose(probs, ref_probs, atol=2e-2))
    assert bool(jnp.allclose(ecg_rep, ref_e, atol=1e-1))
    print("KERNEL_OK")
</pallas_src>

<mosaic_0001>
module attributes {stable_mosaic.version = 11 : i64} {
  func.func @kernel(%arg0: i32, %arg1: i32, %arg2: memref<1x256x128xbf16, #tpu.memory_space<vmem>>, %arg3: memref<128x128xbf16, #tpu.memory_space<vmem>>, %arg4: memref<1x128xf32, #tpu.memory_space<vmem>>, %arg5: memref<128x128xbf16, #tpu.memory_space<vmem>>, %arg6: memref<1x128xf32, #tpu.memory_space<vmem>>, %arg7: memref<128x128xbf16, #tpu.memory_space<vmem>>, %arg8: memref<1x1x128xf32, #tpu.memory_space<vmem>>, %arg9: memref<1x1x128xf32, #tpu.memory_space<vmem>>, %arg10: memref<1x1x1xi32, #tpu.memory_space<vmem>>, %arg11: memref<1x128xf32, #tpu.memory_space<vmem>>) attributes {dimension_semantics = [#tpu.dimension_semantics<parallel>, #tpu.dimension_semantics<arbitrary>], iteration_bounds = array<i64: 2, 2>, scalar_prefetch = 0 : i64, scratch_operands = 1 : i64, tpu.core_type = #tpu.core_type<tc>, window_params = [{transform_indices = @transform_0, window_bounds = array<i64: 1, 256, 128>}, {pipeline_mode = #tpu.pipeline_mode<synchronous>, transform_indices = @transform_1, window_bounds = array<i64: 128, 128>}, {pipeline_mode = #tpu.pipeline_mode<synchronous>, transform_indices = @transform_2, window_bounds = array<i64: 1, 128>}, {pipeline_mode = #tpu.pipeline_mode<synchronous>, transform_indices = @transform_3, window_bounds = array<i64: 128, 128>}, {pipeline_mode = #tpu.pipeline_mode<synchronous>, transform_indices = @transform_4, window_bounds = array<i64: 1, 128>}, {pipeline_mode = #tpu.pipeline_mode<synchronous>, transform_indices = @transform_5, window_bounds = array<i64: 128, 128>}, {transform_indices = @transform_6, window_bounds = array<i64: 1, 1, 128>}, {transform_indices = @transform_7, window_bounds = array<i64: 1, 1, 128>}, {transform_indices = @transform_8, window_bounds = array<i64: 1, 1, 1>}]} {
    %c0_i32 = arith.constant 0 : i32
    %0 = arith.cmpi eq, %arg1, %c0_i32 : i32
    %1 = arith.extui %0 : i1 to i32
    %c0_i32_0 = arith.constant 0 : i32
    %2 = arith.cmpi ne, %1, %c0_i32_0 : i32
    scf.if %2 {
      %cst_15 = arith.constant 0.000000e+00 : f32
      %28 = vector.broadcast %cst_15 : f32 to vector<1x128xf32>
      %c0_16 = arith.constant 0 : index
      %c0_17 = arith.constant 0 : index
      %29 = vector.load %arg11[%c0_16, %c0_17] : memref<1x128xf32, #tpu.memory_space<vmem>>, vector<1x128xf32>
      tpu.vector_store %arg11[%c0_16, %c0_17], %28 {strides = array<i32>} : memref<1x128xf32, #tpu.memory_space<vmem>>, vector<1x128xf32>,
    } else {
    }
    %c0 = arith.constant 0 : index
    %c0_1 = arith.constant 0 : index
    %c0_2 = arith.constant 0 : index
    %3 = vector.load %arg2[%c0, %c0_1, %c0_2] : memref<1x256x128xbf16, #tpu.memory_space<vmem>>, vector<1x256x128xbf16>
    %4 = vector.shape_cast %3 : vector<1x256x128xbf16> to vector<256x128xbf16>
    %c0_3 = arith.constant 0 : index
    %c0_4 = arith.constant 0 : index
    %5 = vector.load %arg3[%c0_3, %c0_4] : memref<128x128xbf16, #tpu.memory_space<vmem>>, vector<128x128xbf16>
    %cst = arith.constant dense<0.000000e+00> : vector<256x128xf32>
    %6 = tpu.matmul %4, %5, %cst {dimension_numbers = #tpu.dot_dimension_numbers<[1], [0], [0], [1], [0, 0, 1, 1], [], []>} : vector<256x128xbf16>, vector<128x128xbf16>, vector<256x128xf32> -> vector<256x128xf32>
    %c0_5 = arith.constant 0 : index
    %c0_6 = arith.constant 0 : index
    %7 = vector.load %arg4[%c0_5, %c0_6] : memref<1x128xf32, #tpu.memory_space<vmem>>, vector<1x128xf32>
    %8 = vector.broadcast %7 : vector<1x128xf32> to vector<256x128xf32>
    %9 = arith.addf %6, %8 : vector<256x128xf32>
    %cst_7 = arith.constant 0.000000e+00 : f32
    %10 = vector.broadcast %cst_7 : f32 to vector<256x128xf32>
    %11 = arith.maximumf %9, %10 : vector<256x128xf32>
    %12 = tpu.iota {dimensions = array<i32: 0>} : vector<256x128xi32>
    %c256_i32 = arith.constant 256 : i32
    %13 = arith.muli %arg1, %c256_i32 : i32
    %14 = vector.broadcast %13 : i32 to vector<256x128xi32>
    %15 = arith.addi %12, %14 : vector<256x128xi32>
    %c500_i32 = arith.constant 500 : i32
    %16 = vector.broadcast %c500_i32 : i32 to vector<256x128xi32>
    %17 = arith.cmpi slt, %15, %16 : vector<256x128xi32>
    %cst_8 = arith.constant 0.000000e+00 : f32
    %18 = vector.broadcast %cst_8 : f32 to vector<256x128xf32>
    %19 = arith.select %17, %11, %18 : vector<256x128xi1>, vector<256x128xf32>
    %c0_9 = arith.constant 0 : index
    %c0_10 = arith.constant 0 : index
    %20 = vector.load %arg11[%c0_9, %c0_10] : memref<1x128xf32, #tpu.memory_space<vmem>>, vector<1x128xf32>
    %cst_11 = arith.constant dense<0.000000e+00> : vector<128xf32>
    %21 = vector.multi_reduction <add>, %19, %cst_11 [0] : vector<256x128xf32> to vector<128xf32>
    %22 = vector.shape_cast %21 : vector<128xf32> to vector<1x128xf32>
    %23 = arith.addf %20, %22 : vector<1x128xf32>
    %c0_12 = arith.constant 0 : index
    %c0_13 = arith.constant 0 : index
    %24 = vector.load %arg11[%c0_12, %c0_13] : memref<1x128xf32, #tpu.memory_space<vmem>>, vector<1x128xf32>
    tpu.vector_store %arg11[%c0_12, %c0_13], %23 {strides = array<i32>} : memref<1x128xf32, #tpu.memory_space<vmem>>, vector<1x128xf32>,
    %c1_i32 = arith.constant 1 : i32
    %25 = arith.cmpi eq, %arg1, %c1_i32 : i32
    %26 = arith.extui %25 : i1 to i32
    %c0_i32_14 = arith.constant 0 : i32
    %27 = arith.cmpi ne, %26, %c0_i32_14 : i32
    scf.if %27 {
      %c0_15 = arith.constant 0 : index
      %c0_16 = arith.constant 0 : index
      %28 = vector.load %arg11[%c0_15, %c0_16] : memref<1x128xf32, #tpu.memory_space<vmem>>, vector<1x128xf32>
      %cst_17 = arith.constant 2.000000e-03 : f32
      %29 = vector.broadcast %cst_17 : f32 to vector<1x128xf32>
      %30 = arith.mulf %28, %29 : vector<1x128xf32>
      %31 = arith.truncf %30 : vector<1x128xf32> to vector<1x128xbf16>
      %c0_18 = arith.constant 0 : index
      %c0_19 = arith.constant 0 : index
      %32 = vector.load %arg5[%c0_18, %c0_19] : memref<128x128xbf16, #tpu.memory_space<vmem>>, vector<128x128xbf16>
      %cst_20 = arith.constant dense<0.000000e+00> : vector<1x128xf32>
      %33 = tpu.matmul %31, %32, %cst_20 {dimension_numbers = #tpu.dot_dimension_numbers<[1], [0], [0], [1], [0, 0, 1, 1], [], []>} : vector<1x128xbf16>, vector<128x128xbf16>, vector<1x128xf32> -> vector<1x128xf32>
      %c0_21 = arith.constant 0 : index
      %c0_22 = arith.constant 0 : index
      %34 = vector.load %arg6[%c0_21, %c0_22] : memref<1x128xf32, #tpu.memory_space<vmem>>, vector<1x128xf32>
      %35 = arith.addf %33, %34 : vector<1x128xf32>
      %c0_23 = arith.constant 0 : index
      %c0_24 = arith.constant 0 : index
      %c0_25 = arith.constant 0 : index
      %36 = vector.load %arg8[%c0_23, %c0_24, %c0_25] : memref<1x1x128xf32, #tpu.memory_space<vmem>>, vector<1x1x128xf32>
      %37 = vector.shape_cast %36 : vector<1x1x128xf32> to vector<1x128xf32>
      %38 = vector.shape_cast %35 : vector<1x128xf32> to vector<1x1x128xf32>
      tpu.vector_store %arg8[%c0_23, %c0_24, %c0_25], %38 {strides = array<i32>} : memref<1x1x128xf32, #tpu.memory_space<vmem>>, vector<1x1x128xf32>,
      %39 = arith.mulf %35, %35 : vector<1x128xf32>
      %cst_26 = arith.constant dense<0.000000e+00> : vector<1xf32>
      %40 = vector.multi_reduction <add>, %39, %cst_26 [1] : vector<1x128xf32> to vector<1xf32>
      %41 = vector.shape_cast %40 : vector<1xf32> to vector<1x1xf32>
      %cst_27 = arith.constant 1.000000e-16 : f32
      %42 = vector.broadcast %cst_27 : f32 to vector<1x1xf32>
      %43 = arith.maximumf %41, %42 : vector<1x1xf32>
      %44 = math.rsqrt %43 : vector<1x1xf32>
      %45 = arith.truncf %35 : vector<1x128xf32> to vector<1x128xbf16>
      %c0_28 = arith.constant 0 : index
      %c0_29 = arith.constant 0 : index
      %46 = vector.load %arg7[%c0_28, %c0_29] : memref<128x128xbf16, #tpu.memory_space<vmem>>, vector<128x128xbf16>
      %cst_30 = arith.constant dense<0.000000e+00> : vector<1x128xf32>
      %47 = tpu.matmul %45, %46, %cst_30 {dimension_numbers = #tpu.dot_dimension_numbers<[1], [0], [0], [1], [0, 0, 1, 1], [], []>} : vector<1x128xbf16>, vector<128x128xbf16>, vector<1x128xf32> -> vector<1x128xf32>
      %48 = vector.broadcast %44 : vector<1x1xf32> to vector<1x128xf32>
      %49 = arith.mulf %47, %48 : vector<1x128xf32>
      %50 = tpu.iota {dimensions = array<i32: 1>} : vector<1x128xi32>
      %c5_i32 = arith.constant 5 : i32
      %51 = vector.broadcast %c5_i32 : i32 to vector<1x128xi32>
      %52 = arith.cmpi slt, %50, %51 : vector<1x128xi32>
      %cst_31 = arith.constant 0xFF800000 : f32
      %53 = vector.broadcast %cst_31 : f32 to vector<1x128xf32>
      %54 = arith.select %52, %49, %53 : vector<1x128xi1>, vector<1x128xf32>
      %cst_32 = arith.constant dense<0xFF800000> : vector<1xf32>
      %55 = vector.multi_reduction <maximumf>, %54, %cst_32 [1] : vector<1x128xf32> to vector<1xf32>
      %56 = vector.shape_cast %55 : vector<1xf32> to vector<1x1xf32>
      %57 = vector.broadcast %56 : vector<1x1xf32> to vector<1x128xf32>
      %58 = arith.subf %54, %57 : vector<1x128xf32>
      %59 = math.exp %58 : vector<1x128xf32>
      %cst_33 = arith.constant dense<0.000000e+00> : vector<1xf32>
      %60 = vector.multi_reduction <add>, %59, %cst_33 [1] : vector<1x128xf32> to vector<1xf32>
      %61 = vector.shape_cast %60 : vector<1xf32> to vector<1x1xf32>
      %62 = vector.broadcast %61 : vector<1x1xf32> to vector<1x128xf32>
      %63 = arith.divf %59, %62 : vector<1x128xf32>
      %c0_34 = arith.constant 0 : index
      %c0_35 = arith.constant 0 : index
      %c0_36 = arith.constant 0 : index
      %64 = vector.load %arg9[%c0_34, %c0_35, %c0_36] : memref<1x1x128xf32, #tpu.memory_space<vmem>>, vector<1x1x128xf32>
      %65 = vector.shape_cast %64 : vector<1x1x128xf32> to vector<1x128xf32>
      %66 = vector.shape_cast %63 : vector<1x128xf32> to vector<1x1x128xf32>
      tpu.vector_store %arg9[%c0_34, %c0_35, %c0_36], %66 {strides = array<i32>} : memref<1x1x128xf32, #tpu.memory_space<vmem>>, vector<1x1x128xf32>,
      %67 = vector.broadcast %56 : vector<1x1xf32> to vector<1x128xf32>
      %68 = arith.cmpf oge, %54, %67 : vector<1x128xf32>
      %c1073741824_i32 = arith.constant 1073741824 : i32
      %69 = vector.broadcast %c1073741824_i32 : i32 to vector<1x128xi32>
      %70 = arith.select %68, %50, %69 : vector<1x128xi1>, vector<1x128xi32>
      %cst_37 = arith.constant dense<2147483647> : vector<1xi32>
      %71 = vector.multi_reduction <minsi>, %70, %cst_37 [1] : vector<1x128xi32> to vector<1xi32>
      %72 = vector.shape_cast %71 : vector<1xi32> to vector<1x1xi32>
      %c0_38 = arith.constant 0 : index
      %c0_39 = arith.constant 0 : index
      %c0_40 = arith.constant 0 : index
      %73 = vector.load %arg10[%c0_38, %c0_39, %c0_40] : memref<1x1x1xi32, #tpu.memory_space<vmem>>, vector<1x1x1xi32>
      %74 = vector.shape_cast %73 : vector<1x1x1xi32> to vector<1x1xi32>
      %75 = vector.shape_cast %72 : vector<1x1xi32> to vector<1x1x1xi32>
      tpu.vector_store %arg10[%c0_38, %c0_39, %c0_40], %75 {strides = array<i32>} : memref<1x1x1xi32, #tpu.memory_space<vmem>>, vector<1x1x1xi32>,
    } else {
    }
    return
  }
  func.func @transform_0(%arg0: i32, %arg1: i32) -> (i32, i32, i32) {
    %c0_i32 = arith.constant 0 : i32
    %c0_i32_0 = arith.constant 0 : i32
    return %arg0, %arg1, %c0_i32 : i32, i32, i32
  }
  func.func @transform_1(%arg0: i32, %arg1: i32) -> (i32, i32) {
    %c0_i32 = arith.constant 0 : i32
    %c0_i32_0 = arith.constant 0 : i32
    %c0_i32_1 = arith.constant 0 : i32
    return %c0_i32, %c0_i32_0 : i32, i32
  }
  func.func @transform_2(%arg0: i32, %arg1: i32) -> (i32, i32) {
    %c0_i32 = arith.constant 0 : i32
    %c0_i32_0 = arith.constant 0 : i32
    %c0_i32_1 = arith.constant 0 : i32
    return %c0_i32, %c0_i32_0 : i32, i32
  }
  func.func @transform_3(%arg0: i32, %arg1: i32) -> (i32, i32) {
    %c0_i32 = arith.constant 0 : i32
    %c0_i32_0 = arith.constant 0 : i32
    %c0_i32_1 = arith.constant 0 : i32
    return %c0_i32, %c0_i32_0 : i32, i32
  }
  func.func @transform_4(%arg0: i32, %arg1: i32) -> (i32, i32) {
    %c0_i32 = arith.constant 0 : i32
    %c0_i32_0 = arith.constant 0 : i32
    %c0_i32_1 = arith.constant 0 : i32
    return %c0_i32, %c0_i32_0 : i32, i32
  }
  func.func @transform_5(%arg0: i32, %arg1: i32) -> (i32, i32) {
    %c0_i32 = arith.constant 0 : i32
    %c0_i32_0 = arith.constant 0 : i32
    %c0_i32_1 = arith.constant 0 : i32
    return %c0_i32, %c0_i32_0 : i32, i32
  }
  func.func @transform_6(%arg0: i32, %arg1: i32) -> (i32, i32, i32) {
    %c0_i32 = arith.constant 0 : i32
    %c0_i32_0 = arith.constant 0 : i32
    %c0_i32_1 = arith.constant 0 : i32
    return %arg0, %c0_i32, %c0_i32_0 : i32, i32, i32
  }
  func.func @transform_7(%arg0: i32, %arg1: i32) -> (i32, i32, i32) {
    %c0_i32 = arith.constant 0 : i32
    %c0_i32_0 = arith.constant 0 : i32
    %c0_i32_1 = arith.constant 0 : i32
    return %arg0, %c0_i32, %c0_i32_0 : i32, i32, i32
  }
  func.func @transform_8(%arg0: i32, %arg1: i32) -> (i32, i32, i32) {
    %c0_i32 = arith.constant 0 : i32
    %c0_i32_0 = arith.constant 0 : i32
    %c0_i32_1 = arith.constant 0 : i32
    return %arg0, %c0_i32, %c0_i32_0 : i32, i32, i32
  }
}

</mosaic_0001>

<llo_original>
// kernel: tpu_custom_call.1
$region0: #{tpu_custom_call.1}
  #allocation0 [shape = 'u32[]', space=smem, size = 0x4, offset = 0x4, fixed_abs, tag = 'smem constant byte address 0x4 - core index']
  #allocation1 [shape = 'u32[144,128]{1,0:T(1,128)}', space=vmem, size = 0x12000, scoped, tag = 'internal scratch']
  #allocation2 [shape = 'f32[1,128]{1,0:T(1,128)}', space=vmem, size = 0x200, scoped, tag = 'scratch operand']
  %s0 = inlined_call_operand.hbm [shape: bf16[2,512,128], index: 0, kind: input, shape index: {}]
  %s1 = inlined_call_operand.hbm [shape: bf16[128,128], index: 1, kind: input, shape index: {}]
  %s2 = inlined_call_operand.vmem [shape: f32[1,128], index: 2, kind: input, shape index: {}]
  %s3 = inlined_call_operand.hbm [shape: bf16[128,128], index: 3, kind: input, shape index: {}]
  %s4 = inlined_call_operand.vmem [shape: f32[1,128], index: 4, kind: input, shape index: {}]
  %s5 = inlined_call_operand.hbm [shape: bf16[128,128], index: 5, kind: input, shape index: {}]
  %s6 = inlined_call_operand.hbm [shape: f32[2,1,128], index: 6, kind: output, shape index: {0}]
  %s7 = inlined_call_operand.hbm [shape: f32[2,1,128], index: 7, kind: output, shape index: {1}]
  %s8 = inlined_call_operand.vmem [shape: s32[2,1,1], index: 8, kind: output, shape index: {2}]
  %9 = xla_tuple %s6, %s7, %s8
  %s10 = sld [smem:[#allocation0]]
  $region97: #{tpu_custom_call.1} parent=0
    _
  %s12 = ssub.s32 1, %s10
  %s13 = scalar_select 0, %s12, %s10
  $region1: #{tpu_custom_call.1} parent=0
    #allocation3 [shape = 'u8[131072]{0}', space=vmem, size = 0x20000, scoped, tag = 'input window, operand 0']
    #allocation4 [shape = 's32[2]{0}', space=sflag, size = 0x8, scoped, tag = 'scoped memory for tpu_custom_call.1']
    #allocation5 [shape = 's32[2]{0}', space=sflag, size = 0x8, scoped, tag = 'scoped memory for tpu_custom_call.1']
    #allocation6 [shape = 'u8[32768]{0}', space=vmem, size = 0x8000, scoped, tag = 'input window, operand 1, single buffered']
    #allocation7 [shape = 's32[1]{0}', space=sflag, size = 0x4, scoped, tag = 'scoped memory for tpu_custom_call.1']
    #allocation8 [shape = 'u8[32768]{0}', space=vmem, size = 0x8000, scoped, tag = 'input window, operand 3, single buffered']
    #allocation9 [shape = 'u8[32768]{0}', space=vmem, size = 0x8000, scoped, tag = 'input window, operand 5, single buffered']
    #allocation10 [shape = 's32[1]{0}', space=sflag, size = 0x4, scoped, tag = 'scoped memory for tpu_custom_call.1']
    #allocation11 [shape = 'u8[1024]{0}', space=vmem, size = 0x400, scoped, tag = 'output window, operand 0']
    #allocation12 [shape = 'u8[1024]{0}', space=vmem, size = 0x400, scoped, tag = 'output window, operand 1']
    #allocation13 [shape = 's32[2]{0}', space=sflag, size = 0x8, scoped, tag = 'scoped memory for tpu_custom_call.1']
    %14 = vsyncpa [#allocation4], 0
    %s15 = scalar_lea.sflag [#allocation4], 1
    %16 = vsyncpa %s15, 0
    %17 = vsyncpa [#allocation7], 0
    %18 = vsyncpa [#allocation10], 0
    %19 = vsyncpa [#allocation5], 0
    %s20 = scalar_lea.sflag [#allocation5], 1
    %21 = vsyncpa %s20, 0
    %22 = vsyncpa [#allocation13], 0
    %s23 = scalar_lea.sflag [#allocation13], 1
    %24 = vsyncpa %s23, 0
    loop: start=0, step=1, limit=6
    $region2: #{tpu_custom_call.1} parent=1 // loop_pre_header
      _
    $region3: #{tpu_custom_call.1} parent=1 // loop_header
      %s26 = sphi 0, %s30
      %p27 = scmp.ge.s32.totalorder %s26, 6
      %s33 = sphi 0, %s45
      %s34 = sphi 0, %s41
      %s35 = sphi 0, %s33
      %s36 = sphi 0, %s34
      %s37 = sphi 0, %s35
      %s38 = sphi 0, %s36
      %s50 = sphi 0, %s52
      %s53 = sphi 0, %s50
      %s54 = sphi 0, %s53
      %s70 = sphi 0, %s54
      %s74 = sphi 0, %s74
      %s76 = sphi 0, %s74
      %s77 = sphi 0, %s76
      %s91 = sphi 0, %s77
      %s95 = sphi 0, %s95
      %s97 = sphi 0, %s95
      %s98 = sphi 0, %s97
      %s112 = sphi 0, %s98
      %s116 = sphi 0, %s116
      %s118 = sphi 0, %s116
      %s119 = sphi 0, %s118
      %s133 = sphi 0, %s119
      %s137 = sphi 0, %s137
      %s139 = sphi 0, %s137
      %s140 = sphi 0, %s139
      %s154 = sphi 0, %s140
      %s158 = sphi 0, %s158
      %s160 = sphi 0, %s158
      %s161 = sphi 0, %s160
      %s175 = sphi 0, %s161
      %s181 = sphi 0, %s183
      %s184 = sphi 0, %s181
      %s185 = sphi 0, %s184
      %s201 = sphi 0, %s185
      %s207 = sphi 0, %s209
      %s210 = sphi 0, %s207
      %s211 = sphi 0, %s210
      %s227 = sphi 0, %s211
      %s233 = sphi 0, %s235
      %s236 = sphi 0, %s233
      %s237 = sphi 0, %s236
      %s253 = sphi 0, %s237
    $region4: #{tpu_custom_call.1} parent=1 // loop_header_branch
      %29 = sbr.rel (%p27) target = $region8
    $region5: #{tpu_custom_call.1} parent=1 // loop_body
      %s31 = ssub.s32 %s26, 1
      %s32 = ssub.s32 %s26, 2
      %s39 = sadd.s32 1, %s34
      %p40 = scmp.ge.s32.totalorder %s39, 2
      %s41 = scalar_select %p40, 0, %s39
      %s42 = sadd.s32 1, %s33
      %s43 = scalar_select %p40, %s42, %s33
      %p44 = scmp.ge.s32.totalorder %s43, 2
      %s45 = scalar_select %p44, 0, %s43
      %s46 = ssub.s32 %s33, %s45
      %s47 = ssub.s32 %s34, %s41
      %s48 = sor.u32 %s46, %s47
      %p49 = scmp.eq.s32.totalorder %s48, 0
      %s51 = sadd.s32 %s50, 1
      %s52 = scalar_select %p49, %s50, %s51
      %p55 = pneg %p49
      %p56 = scmp.eq.s32.totalorder %s26, 3
      %p57 = por %p55, %p56
      %p58 = scmp.ne.s32.totalorder %s50, %s53
      %p59 = scmp.eq.s32.totalorder %s26, 0
      %p60 = por %p58, %p59
      %p61 = scmp.ne.s32.totalorder %s50, %s53
      %p62 = scmp.eq.s32.totalorder %s31, 3
      %p63 = por %p61, %p62
      %p64 = scmp.ne.s32.totalorder %s53, %s54
      %p65 = scmp.eq.s32.totalorder %s31, 0
      %p66 = por %p64, %p65
      %p67 = scmp.ne.s32.totalorder %s53, %s54
      %p68 = scmp.eq.s32.totalorder %s32, 3
      %p69 = por %p67, %p68
      %p71 = scmp.ne.s32.totalorder %s54, %s70
      %p72 = scmp.eq.s32.totalorder %s32, 0
      %p73 = por %p71, %p72
      %s75 = sadd.s32 %s74, 1
      %p78 = scmp.eq.s32.totalorder %s26, 3
      %p79 = scmp.ne.s32.totalorder %s74, %s76
      %p80 = scmp.eq.s32.totalorder %s26, 0
      %p81 = por %p79, %p80
      %p82 = scmp.ne.s32.totalorder %s74, %s76
      %p83 = scmp.eq.s32.totalorder %s31, 3
      %p84 = por %p82, %p83
      %p85 = scmp.ne.s32.totalorder %s76, %s77
      %p86 = scmp.eq.s32.totalorder %s31, 0
      %p87 = por %p85, %p86
      %p88 = scmp.ne.s32.totalorder %s76, %s77
      %p89 = scmp.eq.s32.totalorder %s32, 3
      %p90 = por %p88, %p89
      %p92 = scmp.ne.s32.totalorder %s77, %s91
      %p93 = scmp.eq.s32.totalorder %s32, 0
      %p94 = por %p92, %p93
      %s96 = sadd.s32 %s95, 1
      %p99 = scmp.eq.s32.totalorder %s26, 3
      %p100 = scmp.ne.s32.totalorder %s95, %s97
      %p101 = scmp.eq.s32.totalorder %s26, 0
      %p102 = por %p100, %p101
      %p103 = scmp.ne.s32.totalorder %s95, %s97
      %p104 = scmp.eq.s32.totalorder %s31, 3
      %p105 = por %p103, %p104
      %p106 = scmp.ne.s32.totalorder %s97, %s98
      %p107 = scmp.eq.s32.totalorder %s31, 0
      %p108 = por %p106, %p107
      %p109 = scmp.ne.s32.totalorder %s97, %s98
      %p110 = scmp.eq.s32.totalorder %s32, 3
      %p111 = por %p109, %p110
      %p113 = scmp.ne.s32.totalorder %s98, %s112
      %p114 = scmp.eq.s32.totalorder %s32, 0
      %p115 = por %p113, %p114
      %s117 = sadd.s32 %s116, 1
      %p120 = scmp.eq.s32.totalorder %s26, 3
      %p121 = scmp.ne.s32.totalorder %s116, %s118
      %p122 = scmp.eq.s32.totalorder %s26, 0
      %p123 = por %p121, %p122
      %p124 = scmp.ne.s32.totalorder %s116, %s118
      %p125 = scmp.eq.s32.totalorder %s31, 3
      %p126 = por %p124, %p125
      %p127 = scmp.ne.s32.totalorder %s118, %s119
      %p128 = scmp.eq.s32.totalorder %s31, 0
      %p129 = por %p127, %p128
      %p130 = scmp.ne.s32.totalorder %s118, %s119
      %p131 = scmp.eq.s32.totalorder %s32, 3
      %p132 = por %p130, %p131
      %p134 = scmp.ne.s32.totalorder %s119, %s133
      %p135 = scmp.eq.s32.totalorder %s32, 0
      %p136 = por %p134, %p135
      %s138 = sadd.s32 %s137, 1
      %p141 = scmp.eq.s32.totalorder %s26, 3
      %p142 = scmp.ne.s32.totalorder %s137, %s139
      %p143 = scmp.eq.s32.totalorder %s26, 0
      %p144 = por %p142, %p143
      %p145 = scmp.ne.s32.totalorder %s137, %s139
      %p146 = scmp.eq.s32.totalorder %s31, 3
      %p147 = por %p145, %p146
      %p148 = scmp.ne.s32.totalorder %s139, %s140
      %p149 = scmp.eq.s32.totalorder %s31, 0
      %p150 = por %p148, %p149
      %p151 = scmp.ne.s32.totalorder %s139, %s140
      %p152 = scmp.eq.s32.totalorder %s32, 3
      %p153 = por %p151, %p152
      %p155 = scmp.ne.s32.totalorder %s140, %s154
      %p156 = scmp.eq.s32.totalorder %s32, 0
      %p157 = por %p155, %p156
      %s159 = sadd.s32 %s158, 1
      %p162 = scmp.eq.s32.totalorder %s26, 3
      %p163 = scmp.ne.s32.totalorder %s158, %s160
      %p164 = scmp.eq.s32.totalorder %s26, 0
      %p165 = por %p163, %p164
      %p166 = scmp.ne.s32.totalorder %s158, %s160
      %p167 = scmp.eq.s32.totalorder %s31, 3
      %p168 = por %p166, %p167
      %p169 = scmp.ne.s32.totalorder %s160, %s161
      %p170 = scmp.eq.s32.totalorder %s31, 0
      %p171 = por %p169, %p170
      %p172 = scmp.ne.s32.totalorder %s160, %s161
      %p173 = scmp.eq.s32.totalorder %s32, 3
      %p174 = por %p172, %p173
      %p176 = scmp.ne.s32.totalorder %s161, %s175
      %p177 = scmp.eq.s32.totalorder %s32, 0
      %p178 = por %p176, %p177
      %s179 = ssub.s32 %s33, %s45
      %p180 = scmp.eq.s32.totalorder %s179, 0
      %s182 = sadd.s32 %s181, 1
      %s183 = scalar_select %p180, %s181, %s182
      %p186 = pneg %p180
      %p187 = scmp.eq.s32.totalorder %s26, 3
      %p188 = por %p186, %p187
      %p189 = scmp.ne.s32.totalorder %s181, %s184
      %p190 = scmp.eq.s32.totalorder %s26, 0
      %p191 = por %p189, %p190
      %p192 = scmp.ne.s32.totalorder %s181, %s184
      %p193 = scmp.eq.s32.totalorder %s31, 3
      %p194 = por %p192, %p193
      %p195 = scmp.ne.s32.totalorder %s184, %s185
      %p196 = scmp.eq.s32.totalorder %s31, 0
      %p197 = por %p195, %p196
      %p198 = scmp.ne.s32.totalorder %s184, %s185
      %p199 = scmp.eq.s32.totalorder %s32, 3
      %p200 = por %p198, %p199
      %p202 = scmp.ne.s32.totalorder %s185, %s201
      %p203 = scmp.eq.s32.totalorder %s32, 0
      %p204 = por %p202, %p203
      %s205 = ssub.s32 %s33, %s45
      %p206 = scmp.eq.s32.totalorder %s205, 0
      %s208 = sadd.s32 %s207, 1
      %s209 = scalar_select %p206, %s207, %s208
      %p212 = pneg %p206
      %p213 = scmp.eq.s32.totalorder %s26, 3
      %p214 = por %p212, %p213
      %p215 = scmp.ne.s32.totalorder %s207, %s210
      %p216 = scmp.eq.s32.totalorder %s26, 0
      %p217 = por %p215, %p216
      %p218 = scmp.ne.s32.totalorder %s207, %s210
      %p219 = scmp.eq.s32.totalorder %s31, 3
      %p220 = por %p218, %p219
      %p221 = scmp.ne.s32.totalorder %s210, %s211
      %p222 = scmp.eq.s32.totalorder %s31, 0
      %p223 = por %p221, %p222
      %p224 = scmp.ne.s32.totalorder %s210, %s211
      %p225 = scmp.eq.s32.totalorder %s32, 3
      %p226 = por %p224, %p225
      %p228 = scmp.ne.s32.totalorder %s211, %s227
      %p229 = scmp.eq.s32.totalorder %s32, 0
      %p230 = por %p228, %p229
      %s231 = ssub.s32 %s33, %s45
      %p232 = scmp.eq.s32.totalorder %s231, 0
      %s234 = sadd.s32 %s233, 1
      %s235 = scalar_select %p232, %s233, %s234
      %p238 = pneg %p232
      %p239 = scmp.eq.s32.totalorder %s26, 3
      %p240 = por %p238, %p239
      %p241 = scmp.ne.s32.totalorder %s233, %s236
      %p242 = scmp.eq.s32.totalorder %s26, 0
      %p243 = por %p241, %p242
      %p244 = scmp.ne.s32.totalorder %s233, %s236
      %p245 = scmp.eq.s32.totalorder %s31, 3
      %p246 = por %p244, %p245
      %p247 = scmp.ne.s32.totalorder %s236, %s237
      %p248 = scmp.eq.s32.totalorder %s31, 0
      %p249 = por %p247, %p248
      %p250 = scmp.ne.s32.totalorder %s236, %s237
      %p251 = scmp.eq.s32.totalorder %s32, 3
      %p252 = por %p250, %p251
      %p254 = scmp.ne.s32.totalorder %s237, %s253
      %p255 = scmp.eq.s32.totalorder %s32, 0
      %p256 = por %p254, %p255
      %p257 = scmp.le.s32.totalorder 1, %s26
      %p258 = scmp.lt.s32.totalorder %s26, 5
      %p259 = pnand %p257, %p258
      %p260 = pneg %p259
      // Predicated region
      $region9: #{tpu_custom_call.1} parent=5 // pred_check
        _
      $region10: #{tpu_custom_call.1} parent=5 // pred_check_branch
        %262 = sbr.rel (%p259) target = $region12
      $region11: #{tpu_custom_call.1} parent=5 // pred_region
        %s263 = ssub.s32 %s26, 1
        // Predicated region
        $region13: #{tpu_custom_call.1} parent=11 // pred_check
          %p264 = pneg %p87
        $region14: #{tpu_custom_call.1} parent=11 // pred_check_branch
          %266 = sbr.rel (%p264) target = $region16
        $region15: #{tpu_custom_call.1} parent=11 // pred_region
          %s268 = ssub.s32 1024, 1024
          %269 = vsyncadd [#allocation7], %s268
          %s270 = sshll.u32 [#allocation6], 4
          %s271 = int_to_ptr.vmem [resolvable:$true] %s270
          %276 = dma.hbm_to_vmem [thread:$0]  %s1, 1024, %s271, [#allocation7], 64, 64, 4
        $region16: #{tpu_custom_call.1} parent=11 // pred_fallthru
          _
        // Predicated region
        $region17: #{tpu_custom_call.1} parent=11 // pred_check
          %p277 = pneg %p108
        $region18: #{tpu_custom_call.1} parent=11 // pred_check_branch
          %279 = sbr.rel (%p277) target = $region20
        $region19: #{tpu_custom_call.1} parent=11 // pred_region
          _
        $region20: #{tpu_custom_call.1} parent=11 // pred_fallthru
          _
        // Predicated region
        $region21: #{tpu_custom_call.1} parent=11 // pred_check
          %p280 = pneg %p129
        $region22: #{tpu_custom_call.1} parent=11 // pred_check_branch
          %282 = sbr.rel (%p280) target = $region24
        $region23: #{tpu_custom_call.1} parent=11 // pred_region
          %s284 = ssub.s32 1024, 1024
          %285 = vsyncadd [#allocation7], %s284
          %s286 = sshll.u32 [#allocation8], 4
          %s287 = int_to_ptr.vmem [resolvable:$true] %s286
          %292 = dma.hbm_to_vmem [thread:$0]  %s3, 1024, %s287, [#allocation7], 64, 64, 4
        $region24: #{tpu_custom_call.1} parent=11 // pred_fallthru
          _
        // Predicated region
        $region25: #{tpu_custom_call.1} parent=11 // pred_check
          %p293 = pneg %p150
        $region26: #{tpu_custom_call.1} parent=11 // pred_check_branch
          %295 = sbr.rel (%p293) target = $region28
        $region27: #{tpu_custom_call.1} parent=11 // pred_region
          _
        $region28: #{tpu_custom_call.1} parent=11 // pred_fallthru
          _
        // Predicated region
        $region29: #{tpu_custom_call.1} parent=11 // pred_check
          %p296 = pneg %p171
        $region30: #{tpu_custom_call.1} parent=11 // pred_check_branch
          %298 = sbr.rel (%p296) target = $region32
        $region31: #{tpu_custom_call.1} parent=11 // pred_region
          %s300 = ssub.s32 1024, 1024
          %301 = vsyncadd [#allocation10], %s300
          %s302 = sshll.u32 [#allocation9], 4
          %s303 = int_to_ptr.vmem [resolvable:$true] %s302
          %308 = dma.hbm_to_vmem [thread:$0]  %s5, 1024, %s303, [#allocation10], 64, 64, 4
        $region32: #{tpu_custom_call.1} parent=11 // pred_fallthru
          _
      $region12: #{tpu_custom_call.1} parent=5 // pred_fallthru
        _
      %p309 = scmp.lt.s32.totalorder %s26, 4
      // Predicated region
      $region33: #{tpu_custom_call.1} parent=5 // pred_check
        %p310 = pneg %p309
      $region34: #{tpu_custom_call.1} parent=5 // pred_check_branch
        %312 = sbr.rel (%p310) target = $region36
      $region35: #{tpu_custom_call.1} parent=5 // pred_region
        // Predicated region
        $region37: #{tpu_custom_call.1} parent=35 // pred_check
          %p313 = pneg %p60
        $region38: #{tpu_custom_call.1} parent=35 // pred_check_branch
          %315 = sbr.rel (%p313) target = $region40
        $region39: #{tpu_custom_call.1} parent=35 // pred_region
          %s316 = sand.u32 %s50, 1
          %s317 = scalar_lea.sflag [#allocation4], %s316
          %s318 = sand.u32 %s50, 1
          %s319 = smul.addr %s318, 128
          %s320 = scalar_lea.vmem [#allocation3], %s319
          %s321 = smul.u32 32, %s34
          %s323 = ssub.s32 2048, 2048
          %324 = vsyncadd %s317, %s323
          %s325 = smul.addr %s33, 64
          %s326 = sadd.s32 %s321, %s325
          %s327 = smul.addr %s326, 64
          %s328 = scalar_lea.hbm %s0, %s327
          %s329 = sshll.u32 %s320, 4
          %s330 = int_to_ptr.vmem [resolvable:$true] %s329
          %335 = dma.hbm_to_vmem [thread:$0]  %s328, 2048, %s330, %s317, 64, 64, 4
        $region40: #{tpu_custom_call.1} parent=35 // pred_fallthru
          _
      $region36: #{tpu_custom_call.1} parent=5 // pred_fallthru
        _
      %p336 = scmp.le.s32.totalorder 1, %s26
      %p337 = scmp.lt.s32.totalorder %s26, 5
      %p338 = pnand %p336, %p337
      %p339 = pneg %p338
      // Predicated region
      $region41: #{tpu_custom_call.1} parent=5 // pred_check
        _
      $region42: #{tpu_custom_call.1} parent=5 // pred_check_branch
        %341 = sbr.rel (%p338) target = $region44
      $region43: #{tpu_custom_call.1} parent=5 // pred_region
        %s342 = ssub.s32 %s26, 1
        %s343 = sand.u32 %s53, 1
        %s344 = scalar_lea.sflag [#allocation4], %s343
        %s345 = sand.u32 %s53, 1
        %s346 = smul.addr %s345, 128
        %s347 = scalar_lea.vmem [#allocation3], %s346
        // Predicated region
        $region45: #{tpu_custom_call.1} parent=43 // pred_check
          %p348 = pneg %p66
        $region46: #{tpu_custom_call.1} parent=43 // pred_check_branch
          %350 = sbr.rel (%p348) target = $region48
        $region47: #{tpu_custom_call.1} parent=43 // pred_region
          %351 = dma.done %s344, 2048
        $region48: #{tpu_custom_call.1} parent=43 // pred_fallthru
          _
        // Predicated region
        $region49: #{tpu_custom_call.1} parent=43 // pred_check
          %p352 = pneg %p87
        $region50: #{tpu_custom_call.1} parent=43 // pred_check_branch
          %354 = sbr.rel (%p352) target = $region52
        $region51: #{tpu_custom_call.1} parent=43 // pred_region
          %355 = dma.done [#allocation7], 1024
        $region52: #{tpu_custom_call.1} parent=43 // pred_fallthru
          _
        // Predicated region
        $region53: #{tpu_custom_call.1} parent=43 // pred_check
          %p356 = pneg %p129
        $region54: #{tpu_custom_call.1} parent=43 // pred_check_branch
          %358 = sbr.rel (%p356) target = $region56
        $region55: #{tpu_custom_call.1} parent=43 // pred_region
          %359 = dma.done [#allocation7], 1024
        $region56: #{tpu_custom_call.1} parent=43 // pred_fallthru
          _
        // Predicated region
        $region57: #{tpu_custom_call.1} parent=43 // pred_check
          %p360 = pneg %p171
        $region58: #{tpu_custom_call.1} parent=43 // pred_check_branch
          %362 = sbr.rel (%p360) target = $region60
        $region59: #{tpu_custom_call.1} parent=43 // pred_region
          %363 = dma.done [#allocation10], 1024
        $region60: #{tpu_custom_call.1} parent=43 // pred_fallthru
          _
        %s364 = sand.u32 %s53, 1
        %s365 = scalar_lea.sflag [#allocation4], %s364
        %s366 = sand.u32 %s53, 1
        %s367 = smul.addr %s366, 128
        %s368 = scalar_lea.vmem [#allocation3], %s367
        %p369 = pneg %p66
        %p370 = pneg %p63
        %p371 = pneg %p87
        %p372 = pneg %p84
        %p373 = pneg %p108
        %p374 = pneg %p105
        %p375 = pneg %p129
        %p376 = pneg %p126
        %p377 = pneg %p150
        %p378 = pneg %p147
        %p379 = pneg %p171
        %p380 = pneg %p168
        %p381 = pneg %p197
        %p382 = pneg %p194
        %s383 = sand.u32 %s184, 1
        %s384 = scalar_lea.sflag [#allocation5], %s383
        %s385 = sand.u32 %s184, 1
        %s386 = scalar_lea.vmem [#allocation11], %s385
        %p387 = pneg %p223
        %p388 = pneg %p220
        %s389 = sand.u32 %s210, 1
        %s390 = scalar_lea.sflag [#allocation13], %s389
        %s391 = sand.u32 %s210, 1
        %s392 = scalar_lea.vmem [#allocation12], %s391
        %p393 = pneg %p249
        %p394 = pneg %p246
        %p395 = scmp.lt.s32.totalorder %s35, 1
        %s396 = scalar_select %p395, %s35, 1
        %s397 = scalar_lea.vmem %s8, %s396
        %s398 = smul.u32 32, %s36
        %p399 = scmp.lt.s32.totalorder %s35, 1
        %s400 = scalar_select %p399, %s35, 1
        %s401 = scalar_lea.vmem %s8, %s400
        %p403 = scmp.eq.s32.totalorder %s36, 0
        // Predicated region
        $region61: #{tpu_custom_call.1} parent=43 // pred_check
          %p404 = pneg %p403
        $region62: #{tpu_custom_call.1} parent=43 // pred_check_branch
          %406 = sbr.rel (%p404) target = $region64
        $region63: #{tpu_custom_call.1} parent=43 // pred_region
          %407 = vst [vmem:[#allocation2] sm:$0x1] 0.0
        $region64: #{tpu_custom_call.1} parent=43 // pred_fallthru
          _
        %v408 = vld [vmem:[%s347] sm:$0xf]
        %v409 = vld [vmem:[%s347 + $0x4] sm:$0xf]
        %v410 = vld [vmem:[%s347 + $0x8] sm:$0xf]
        %v411 = vld [vmem:[%s347 + $0xc] sm:$0xf]
        %v412 = vld [vmem:[%s347 + $0x10] sm:$0xf]
        %v413 = vld [vmem:[%s347 + $0x14] sm:$0xf]
        %v414 = vld [vmem:[%s347 + $0x18] sm:$0xf]
        %v415 = vld [vmem:[%s347 + $0x1c] sm:$0xf]
        %v416 = vld [vmem:[%s347 + $0x20] sm:$0xf]
        %v417 = vld [vmem:[%s347 + $0x24] sm:$0xf]
        %v418 = vld [vmem:[%s347 + $0x28] sm:$0xf]
        %v419 = vld [vmem:[%s347 + $0x2c] sm:$0xf]
        %v420 = vld [vmem:[%s347 + $0x30] sm:$0xf]
        %v421 = vld [vmem:[%s347 + $0x34] sm:$0xf]
        %v422 = vld [vmem:[%s347 + $0x38] sm:$0xf]
        %v423 = vld [vmem:[%s347 + $0x3c] sm:$0xf]
        %v424 = vld [vmem:[%s347 + $0x40] sm:$0xf]
        %v425 = vld [vmem:[%s347 + $0x44] sm:$0xf]
        %v426 = vld [vmem:[%s347 + $0x48] sm:$0xf]
        %v427 = vld [vmem:[%s347 + $0x4c] sm:$0xf]
        %v428 = vld [vmem:[%s347 + $0x50] sm:$0xf]
        %v429 = vld [vmem:[%s347 + $0x54] sm:$0xf]
        %v430 = vld [vmem:[%s347 + $0x58] sm:$0xf]
        %v431 = vld [vmem:[%s347 + $0x5c] sm:$0xf]
        %v432 = vld [vmem:[%s347 + $0x60] sm:$0xf]
        %v433 = vld [vmem:[%s347 + $0x64] sm:$0xf]
        %v434 = vld [vmem:[%s347 + $0x68] sm:$0xf]
        %v435 = vld [vmem:[%s347 + $0x6c] sm:$0xf]
        %v436 = vld [vmem:[%s347 + $0x70] sm:$0xf]
        %v437 = vld [vmem:[%s347 + $0x74] sm:$0xf]
        %v438 = vld [vmem:[%s347 + $0x78] sm:$0xf]
        %v439 = vld [vmem:[%s347 + $0x7c] sm:$0xf]
        %v440 = vld [vmem:[#allocation6] sm:$0xf]
        %v441 = vld [vmem:[#allocation6 + $0x4] sm:$0xf]
        %v442 = vld [vmem:[#allocation6 + $0x8] sm:$0xf]
        %v443 = vld [vmem:[#allocation6 + $0xc] sm:$0xf]
        %v444 = vld [vmem:[#allocation6 + $0x10] sm:$0xf]
        %v445 = vld [vmem:[#allocation6 + $0x14] sm:$0xf]
        %v446 = vld [vmem:[#allocation6 + $0x18] sm:$0xf]
        %v447 = vld [vmem:[#allocation6 + $0x1c] sm:$0xf]
        %v448 = vld [vmem:[#allocation6 + $0x20] sm:$0xf]
        %v449 = vld [vmem:[#allocation6 + $0x24] sm:$0xf]
        %v450 = vld [vmem:[#allocation6 + $0x28] sm:$0xf]
        %v451 = vld [vmem:[#allocation6 + $0x2c] sm:$0xf]
        %v452 = vld [vmem:[#allocation6 + $0x30] sm:$0xf]
        %v453 = vld [vmem:[#allocation6 + $0x34] sm:$0xf]
        %v454 = vld [vmem:[#allocation6 + $0x38] sm:$0xf]
        %v455 = vld [vmem:[#allocation6 + $0x3c] sm:$0xf]
        %v456 = vld [vmem:[%s2] sm:$0x1]
        %v458 = vlaneseq
        %v459 = vshrl.u32 %v458, 7
        %v460 = vsub.s32 0, %v459
        %v461 = vrot.slane %v456, %v460
        %v495 = vunpack.c.l.b16 %v408
        %v496 = vunpack.c.l.b16 %v409
        %v497 = vunpack.c.l.b16 %v410
        %v498 = vunpack.c.l.b16 %v411
        %v499 = vunpack.c.l.b16 %v412
        %v500 = vunpack.c.l.b16 %v413
        %v501 = vunpack.c.l.b16 %v414
        %v502 = vunpack.c.l.b16 %v415
        %v503 = vunpack.c.l.b16 %v416
        %v504 = vunpack.c.l.b16 %v417
        %v505 = vunpack.c.l.b16 %v418
        %v506 = vunpack.c.l.b16 %v419
        %v507 = vunpack.c.l.b16 %v420
        %v508 = vunpack.c.l.b16 %v421
        %v509 = vunpack.c.l.b16 %v422
        %v510 = vunpack.c.l.b16 %v423
        %v511 = vunpack.c.l.b16 %v424
        %v512 = vunpack.c.l.b16 %v425
        %v513 = vunpack.c.l.b16 %v426
        %v514 = vunpack.c.l.b16 %v427
        %v515 = vunpack.c.l.b16 %v428
        %v516 = vunpack.c.l.b16 %v429
        %v517 = vunpack.c.l.b16 %v430
        %v518 = vunpack.c.l.b16 %v431
        %v519 = vunpack.c.l.b16 %v432
        %v520 = vunpack.c.l.b16 %v433
        %v521 = vunpack.c.l.b16 %v434
        %v522 = vunpack.c.l.b16 %v435
        %v523 = vunpack.c.l.b16 %v436
        %v524 = vunpack.c.l.b16 %v437
        %v525 = vunpack.c.l.b16 %v438
        %v526 = vunpack.c.l.b16 %v439
        %v527 = vpack.c.b16 %v496, %v495
        %v528 = vpack.c.b16 %v498, %v497
        %v529 = vpack.c.b16 %v500, %v499
        %v530 = vpack.c.b16 %v502, %v501
        %v531 = vpack.c.b16 %v504, %v503
        %v532 = vpack.c.b16 %v506, %v505
        %v533 = vpack.c.b16 %v508, %v507
        %v534 = vpack.c.b16 %v510, %v509
        %v535 = vpack.c.b16 %v512, %v511
        %v536 = vpack.c.b16 %v514, %v513
        %v537 = vpack.c.b16 %v516, %v515
        %v538 = vpack.c.b16 %v518, %v517
        %v539 = vpack.c.b16 %v520, %v519
        %v540 = vpack.c.b16 %v522, %v521
        %v541 = vpack.c.b16 %v524, %v523
        %v542 = vpack.c.b16 %v526, %v525
        %v575 = vunpack.c.l.b16 %v440
        %v576 = vunpack.c.l.b16 %v441
        %v577 = vunpack.c.l.b16 %v442
        %v578 = vunpack.c.l.b16 %v443
        %v579 = vunpack.c.l.b16 %v444
        %v580 = vunpack.c.l.b16 %v445
        %v581 = vunpack.c.l.b16 %v446
        %v582 = vunpack.c.l.b16 %v447
        %v583 = vunpack.c.l.b16 %v448
        %v584 = vunpack.c.l.b16 %v449
        %v585 = vunpack.c.l.b16 %v450
        %v586 = vunpack.c.l.b16 %v451
        %v587 = vunpack.c.l.b16 %v452
        %v588 = vunpack.c.l.b16 %v453
        %v589 = vunpack.c.l.b16 %v454
        %v590 = vunpack.c.l.b16 %v455
        %v591 = vpack.c.b16 %v576, %v575
        %v592 = vpack.c.b16 %v578, %v577
        %v593 = vpack.c.b16 %v580, %v579
        %v594 = vpack.c.b16 %v582, %v581
        %v595 = vpack.c.b16 %v584, %v583
        %v596 = vpack.c.b16 %v586, %v585
        %v597 = vpack.c.b16 %v588, %v587
        %v598 = vpack.c.b16 %v590, %v589
        %607 = vmatprep.subr.bf16.mxu0 0
        %608 = vmatpush1.bf16.msra.mxu0 %v598
        %609 = vmatprep.subr.bf16.mxu0 0
        %610 = vmatpush1.bf16.msra.mxu0 %v597
        %611 = vmatprep.subr.bf16.mxu0 0
        %612 = vmatpush1.bf16.msra.mxu0 %v596
        %613 = vmatprep.subr.bf16.mxu0 0
        %614 = vmatpush1.bf16.msra.mxu0 %v595
        %615 = vmatprep.subr.bf16.mxu0 0
        %616 = vmatpush1.bf16.msra.mxu0 %v594
        %617 = vmatprep.subr.bf16.mxu0 0
        %618 = vmatpush1.bf16.msra.mxu0 %v593
        %619 = vmatprep.subr.bf16.mxu0 0
        %620 = vmatpush1.bf16.msra.mxu0 %v592
        %621 = vmatprep.subr.bf16.mxu0 0
        %622 = vmatpush1.bf16.msra.mxu0 %v591
        %623 = vmatprep.subr.bf16.mxu0 0
        %624 = vmatpush2.bf16.msra.mxu0 0
        %625 = vmatprep.subr.bf16.mxu0 0
        %626 = vmatpush2.bf16.msra.mxu0 0
        %627 = vmatprep.subr.bf16.mxu0 0
        %628 = vmatpush2.bf16.msra.mxu0 0
        %629 = vmatprep.subr.bf16.mxu0 0
        %630 = vmatpush2.bf16.msra.mxu0 0
        %631 = vmatprep.subr.bf16.mxu0 0
        %632 = vmatpush2.bf16.msra.mxu0 0
        %633 = vmatprep.subr.bf16.mxu0 0
        %634 = vmatpush2.bf16.msra.mxu0 0
        %635 = vmatprep.subr.bf16.mxu0 0
        %636 = vmatpush2.bf16.msra.mxu0 0
        %637 = vmatprep.subr.bf16.mxu0 0
        %638 = vmatpush2.bf16.msra.mxu0 0
        %639 = vmatprep.mubr.bf16.mxu0 0
        %640 = vmatmul.mubr.bf16.gmra.mxu0 %v527
        %v641 = vpop.f32.mrf.mxu0
        %v642 = vadd.f32 %v461, %v641
        %v643 = vpop.f32.mrf.mxu0
        %v644 = vpop.f32.mrf.mxu0
        %v645 = vadd.f32 %v461, %v644
        %v646 = vpop.f32.mrf.mxu0
        %647 = vmatprep.mubr.bf16.mxu0 0
        %648 = vmatmul.mubr.bf16.gmra.mxu0 %v528
        %v649 = vpop.f32.mrf.mxu0
        %v650 = vadd.f32 %v461, %v649
        %v651 = vpop.f32.mrf.mxu0
        %v652 = vpop.f32.mrf.mxu0
        %v653 = vadd.f32 %v461, %v652
        %v654 = vpop.f32.mrf.mxu0
        %655 = vmatprep.mubr.bf16.mxu0 0
        %656 = vmatmul.mubr.bf16.gmra.mxu0 %v529
        %v657 = vpop.f32.mrf.mxu0
        %v658 = vadd.f32 %v461, %v657
        %v659 = vpop.f32.mrf.mxu0
        %v660 = vpop.f32.mrf.mxu0
        %v661 = vadd.f32 %v461, %v660
        %v662 = vpop.f32.mrf.mxu0
        %663 = vmatprep.mubr.bf16.mxu0 0
        %664 = vmatmul.mubr.bf16.gmra.mxu0 %v530
        %v665 = vpop.f32.mrf.mxu0
        %v666 = vadd.f32 %v461, %v665
        %v667 = vpop.f32.mrf.mxu0
        %v668 = vpop.f32.mrf.mxu0
        %v669 = vadd.f32 %v461, %v668
        %v670 = vpop.f32.mrf.mxu0
        %671 = vmatprep.mubr.bf16.mxu0 0
        %672 = vmatmul.mubr.bf16.gmra.mxu0 %v531
        %v673 = vpop.f32.mrf.mxu0
        %v674 = vadd.f32 %v461, %v673
        %v675 = vpop.f32.mrf.mxu0
        %v676 = vpop.f32.mrf.mxu0
        %v677 = vadd.f32 %v461, %v676
        %v678 = vpop.f32.mrf.mxu0
        %679 = vmatprep.mubr.bf16.mxu0 0
        %680 = vmatmul.mubr.bf16.gmra.mxu0 %v532
        %v681 = vpop.f32.mrf.mxu0
        %v682 = vadd.f32 %v461, %v681
        %v683 = vpop.f32.mrf.mxu0
        %v684 = vpop.f32.mrf.mxu0
        %v685 = vadd.f32 %v461, %v684
        %v686 = vpop.f32.mrf.mxu0
        %687 = vmatprep.mubr.bf16.mxu0 0
        %688 = vmatmul.mubr.bf16.gmra.mxu0 %v533
        %v689 = vpop.f32.mrf.mxu0
        %v690 = vadd.f32 %v461, %v689
        %v691 = vpop.f32.mrf.mxu0
        %v692 = vpop.f32.mrf.mxu0
        %v693 = vadd.f32 %v461, %v692
        %v694 = vpop.f32.mrf.mxu0
        %695 = vmatprep.mubr.bf16.mxu0 0
        %696 = vmatmul.mubr.bf16.gmra.mxu0 %v534
        %v697 = vpop.f32.mrf.mxu0
        %v698 = vadd.f32 %v461, %v697
        %v699 = vpop.f32.mrf.mxu0
        %v700 = vpop.f32.mrf.mxu0
        %v701 = vadd.f32 %v461, %v700
        %v702 = vpop.f32.mrf.mxu0
        %703 = vmatprep.mubr.bf16.mxu0 0
        %704 = vmatmul.mubr.bf16.gmra.mxu0 %v535
        %v705 = vpop.f32.mrf.mxu0
        %v706 = vadd.f32 %v461, %v705
        %v707 = vpop.f32.mrf.mxu0
        %v708 = vpop.f32.mrf.mxu0
        %v709 = vadd.f32 %v461, %v708
        %v710 = vpop.f32.mrf.mxu0
        %711 = vmatprep.mubr.bf16.mxu0 0
        %712 = vmatmul.mubr.bf16.gmra.mxu0 %v536
        %v713 = vpop.f32.mrf.mxu0
        %v714 = vadd.f32 %v461, %v713
        %v715 = vpop.f32.mrf.mxu0
        %v716 = vpop.f32.mrf.mxu0
        %v717 = vadd.f32 %v461, %v716
        %v718 = vpop.f32.mrf.mxu0
        %719 = vmatprep.mubr.bf16.mxu0 0
        %720 = vmatmul.mubr.bf16.gmra.mxu0 %v537
        %v721 = vpop.f32.mrf.mxu0
        %v722 = vadd.f32 %v461, %v721
        %v723 = vpop.f32.mrf.mxu0
        %v724 = vpop.f32.mrf.mxu0
        %v725 = vadd.f32 %v461, %v724
        %v726 = vpop.f32.mrf.mxu0
        %727 = vmatprep.mubr.bf16.mxu0 0
        %728 = vmatmul.mubr.bf16.gmra.mxu0 %v538
        %v729 = vpop.f32.mrf.mxu0
        %v730 = vadd.f32 %v461, %v729
        %v731 = vpop.f32.mrf.mxu0
        %v732 = vpop.f32.mrf.mxu0
        %v733 = vadd.f32 %v461, %v732
        %v734 = vpop.f32.mrf.mxu0
        %735 = vmatprep.mubr.bf16.mxu0 0
        %736 = vmatmul.mubr.bf16.gmra.mxu0 %v539
        %v737 = vpop.f32.mrf.mxu0
        %v738 = vadd.f32 %v461, %v737
        %v739 = vpop.f32.mrf.mxu0
        %v740 = vpop.f32.mrf.mxu0
        %v741 = vadd.f32 %v461, %v740
        %v742 = vpop.f32.mrf.mxu0
        %743 = vmatprep.mubr.bf16.mxu0 0
        %744 = vmatmul.mubr.bf16.gmra.mxu0 %v540
        %v745 = vpop.f32.mrf.mxu0
        %v746 = vadd.f32 %v461, %v745
        %v747 = vpop.f32.mrf.mxu0
        %v748 = vpop.f32.mrf.mxu0
        %v749 = vadd.f32 %v461, %v748
        %v750 = vpop.f32.mrf.mxu0
        %751 = vmatprep.mubr.bf16.mxu0 0
        %752 = vmatmul.mubr.bf16.gmra.mxu0 %v541
        %v753 = vpop.f32.mrf.mxu0
        %v754 = vadd.f32 %v461, %v753
        %v755 = vpop.f32.mrf.mxu0
        %v756 = vpop.f32.mrf.mxu0
        %v757 = vadd.f32 %v461, %v756
        %v758 = vpop.f32.mrf.mxu0
        %759 = vmatprep.mubr.bf16.mxu0 0
        %760 = vmatmul.mubr.bf16.gmra.mxu0 %v542
        %v761 = vpop.f32.mrf.mxu0
        %v762 = vadd.f32 %v461, %v761
        %v763 = vpop.f32.mrf.mxu0
        %v764 = vpop.f32.mrf.mxu0
        %v765 = vadd.f32 %v461, %v764
        %v766 = vpop.f32.mrf.mxu0
        %767 = vdwg.mxu0
        %v768 = vmax.f32 %v642, 0.0
        %v769 = vmax.f32 %v645, 0.0
        %v770 = vmax.f32 %v650, 0.0
        %v771 = vmax.f32 %v653, 0.0
        %v772 = vmax.f32 %v658, 0.0
        %v773 = vmax.f32 %v661, 0.0
        %v774 = vmax.f32 %v666, 0.0
        %v775 = vmax.f32 %v669, 0.0
        %v776 = vmax.f32 %v674, 0.0
        %v777 = vmax.f32 %v677, 0.0
        %v778 = vmax.f32 %v682, 0.0
        %v779 = vmax.f32 %v685, 0.0
        %v780 = vmax.f32 %v690, 0.0
        %v781 = vmax.f32 %v693, 0.0
        %v782 = vmax.f32 %v698, 0.0
        %v783 = vmax.f32 %v701, 0.0
        %v784 = vmax.f32 %v706, 0.0
        %v785 = vmax.f32 %v709, 0.0
        %v786 = vmax.f32 %v714, 0.0
        %v787 = vmax.f32 %v717, 0.0
        %v788 = vmax.f32 %v722, 0.0
        %v789 = vmax.f32 %v725, 0.0
        %v790 = vmax.f32 %v730, 0.0
        %v791 = vmax.f32 %v733, 0.0
        %v792 = vmax.f32 %v738, 0.0
        %v793 = vmax.f32 %v741, 0.0
        %v794 = vmax.f32 %v746, 0.0
        %v795 = vmax.f32 %v749, 0.0
        %v796 = vmax.f32 %v754, 0.0
        %v797 = vmax.f32 %v757, 0.0
        %v798 = vmax.f32 %v762, 0.0
        %v799 = vmax.f32 %v765, 0.0
        %v800 = vlaneseq
        %v801 = vshrl.u32 %v800, 7
        %v802 = vadd.s32 %v801, 8
        %v803 = vadd.s32 %v801, 16
        %v804 = vadd.s32 %v801, 24
        %v805 = vadd.s32 %v801, 32
        %v806 = vadd.s32 %v801, 40
        %v807 = vadd.s32 %v801, 48
        %v808 = vadd.s32 %v801, 56
        %v809 = vadd.s32 %v801, 64
        %v810 = vadd.s32 %v801, 72
        %v811 = vadd.s32 %v801, 80
        %v812 = vadd.s32 %v801, 88
        %v813 = vadd.s32 %v801, 96
        %v814 = vadd.s32 %v801, 104
        %v815 = vadd.s32 %v801, 112
        %v816 = vadd.s32 %v801, 120
        %v817 = vadd.s32 %v801, 128
        %v818 = vadd.s32 %v801, 136
        %v819 = vadd.s32 %v801, 144
        %v820 = vadd.s32 %v801, 152
        %v821 = vadd.s32 %v801, 160
        %v822 = vadd.s32 %v801, 168
        %v823 = vadd.s32 %v801, 176
        %v824 = vadd.s32 %v801, 184
        %v825 = vadd.s32 %v801, 192
        %v826 = vadd.s32 %v801, 200
        %v827 = vadd.s32 %v801, 208
        %v828 = vadd.s32 %v801, 216
        %v829 = vadd.s32 %v801, 224
        %v830 = vadd.s32 %v801, 232
        %v831 = vadd.s32 %v801, 240
        %v832 = vadd.s32 %v801, 248
        %s833 = smul.u32 %s36, 256
        %v834 = vstv %s833
        %v835 = vadd.s32 %v801, %v834
        %v836 = vadd.s32 %v802, %v834
        %v837 = vadd.s32 %v803, %v834
        %v838 = vadd.s32 %v804, %v834
        %v839 = vadd.s32 %v805, %v834
        %v840 = vadd.s32 %v806, %v834
        %v841 = vadd.s32 %v807, %v834
        %v842 = vadd.s32 %v808, %v834
        %v843 = vadd.s32 %v809, %v834
        %v844 = vadd.s32 %v810, %v834
        %v845 = vadd.s32 %v811, %v834
        %v846 = vadd.s32 %v812, %v834
        %v847 = vadd.s32 %v813, %v834
        %v848 = vadd.s32 %v814, %v834
        %v849 = vadd.s32 %v815, %v834
        %v850 = vadd.s32 %v816, %v834
        %v851 = vadd.s32 %v817, %v834
        %v852 = vadd.s32 %v818, %v834
        %v853 = vadd.s32 %v819, %v834
        %v854 = vadd.s32 %v820, %v834
        %v855 = vadd.s32 %v821, %v834
        %v856 = vadd.s32 %v822, %v834
        %v857 = vadd.s32 %v823, %v834
        %v858 = vadd.s32 %v824, %v834
        %v859 = vadd.s32 %v825, %v834
        %v860 = vadd.s32 %v826, %v834
        %v861 = vadd.s32 %v827, %v834
        %v862 = vadd.s32 %v828, %v834
        %v863 = vadd.s32 %v829, %v834
        %v864 = vadd.s32 %v830, %v834
        %v865 = vadd.s32 %v831, %v834
        %v866 = vadd.s32 %v832, %v834
        %vm867 = vcmp.lt.s32.totalorder %v835, 500
        %vm868 = vcmp.lt.s32.totalorder %v836, 500
        %vm869 = vcmp.lt.s32.totalorder %v837, 500
        %vm870 = vcmp.lt.s32.totalorder %v838, 500
        %vm871 = vcmp.lt.s32.totalorder %v839, 500
        %vm872 = vcmp.lt.s32.totalorder %v840, 500
        %vm873 = vcmp.lt.s32.totalorder %v841, 500
        %vm874 = vcmp.lt.s32.totalorder %v842, 500
        %vm875 = vcmp.lt.s32.totalorder %v843, 500
        %vm876 = vcmp.lt.s32.totalorder %v844, 500
        %vm877 = vcmp.lt.s32.totalorder %v845, 500
        %vm878 = vcmp.lt.s32.totalorder %v846, 500
        %vm879 = vcmp.lt.s32.totalorder %v847, 500
        %vm880 = vcmp.lt.s32.totalorder %v848, 500
        %vm881 = vcmp.lt.s32.totalorder %v849, 500
        %vm882 = vcmp.lt.s32.totalorder %v850, 500
        %vm883 = vcmp.lt.s32.totalorder %v851, 500
        %vm884 = vcmp.lt.s32.totalorder %v852, 500
        %vm885 = vcmp.lt.s32.totalorder %v853, 500
        %vm886 = vcmp.lt.s32.totalorder %v854, 500
        %vm887 = vcmp.lt.s32.totalorder %v855, 500
        %vm888 = vcmp.lt.s32.totalorder %v856, 500
        %vm889 = vcmp.lt.s32.totalorder %v857, 500
        %vm890 = vcmp.lt.s32.totalorder %v858, 500
        %vm891 = vcmp.lt.s32.totalorder %v859, 500
        %vm892 = vcmp.lt.s32.totalorder %v860, 500
        %vm893 = vcmp.lt.s32.totalorder %v861, 500
        %vm894 = vcmp.lt.s32.totalorder %v862, 500
        %vm895 = vcmp.lt.s32.totalorder %v863, 500
        %vm896 = vcmp.lt.s32.totalorder %v864, 500
        %vm897 = vcmp.lt.s32.totalorder %v865, 500
        %vm898 = vcmp.lt.s32.totalorder %v866, 500
        %v899 = vsel %vm867, %v768, 0.0
        %v900 = vsel %vm868, %v769, 0.0
        %v901 = vsel %vm869, %v770, 0.0
        %v902 = vsel %vm870, %v771, 0.0
        %v903 = vsel %vm871, %v772, 0.0
        %v904 = vsel %vm872, %v773, 0.0
        %v905 = vsel %vm873, %v774, 0.0
        %v906 = vsel %vm874, %v775, 0.0
        %v907 = vsel %vm875, %v776, 0.0
        %v908 = vsel %vm876, %v777, 0.0
        %v909 = vsel %vm877, %v778, 0.0
        %v910 = vsel %vm878, %v779, 0.0
        %v911 = vsel %vm879, %v780, 0.0
        %v912 = vsel %vm880, %v781, 0.0
        %v913 = vsel %vm881, %v782, 0.0
        %v914 = vsel %vm882, %v783, 0.0
        %v915 = vsel %vm883, %v784, 0.0
        %v916 = vsel %vm884, %v785, 0.0
        %v917 = vsel %vm885, %v786, 0.0
        %v918 = vsel %vm886, %v787, 0.0
        %v919 = vsel %vm887, %v788, 0.0
        %v920 = vsel %vm888, %v789, 0.0
        %v921 = vsel %vm889, %v790, 0.0
        %v922 = vsel %vm890, %v791, 0.0
        %v923 = vsel %vm891, %v792, 0.0
        %v924 = vsel %vm892, %v793, 0.0
        %v925 = vsel %vm893, %v794, 0.0
        %v926 = vsel %vm894, %v795, 0.0
        %v927 = vsel %vm895, %v796, 0.0
        %v928 = vsel %vm896, %v797, 0.0
        %v929 = vsel %vm897, %v798, 0.0
        %v930 = vsel %vm898, %v799, 0.0
        %v931 = vld [vmem:[#allocation2] sm:$0x1]
        %v932 = vadd.f32 %v899, %v900
        %v933 = vadd.f32 %v932, %v901
        %v934 = vadd.f32 %v933, %v902
        %v935 = vadd.f32 %v934, %v903
        %v936 = vadd.f32 %v935, %v904
        %v937 = vadd.f32 %v936, %v905
        %v938 = vadd.f32 %v937, %v906
        %v939 = vadd.f32 %v938, %v907
        %v940 = vadd.f32 %v939, %v908
        %v941 = vadd.f32 %v940, %v909
        %v942 = vadd.f32 %v941, %v910
        %v943 = vadd.f32 %v942, %v911
        %v944 = vadd.f32 %v943, %v912
        %v945 = vadd.f32 %v944, %v913
        %v946 = vadd.f32 %v945, %v914
        %v947 = vadd.f32 %v946, %v915
        %v948 = vadd.f32 %v947, %v916
        %v949 = vadd.f32 %v948, %v917
        %v950 = vadd.f32 %v949, %v918
        %v951 = vadd.f32 %v950, %v919
        %v952 = vadd.f32 %v951, %v920
        %v953 = vadd.f32 %v952, %v921
        %v954 = vadd.f32 %v953, %v922
        %v955 = vadd.f32 %v954, %v923
        %v956 = vadd.f32 %v955, %v924
        %v957 = vadd.f32 %v956, %v925
        %v958 = vadd.f32 %v957, %v926
        %v959 = vadd.f32 %v958, %v927
        %v960 = vadd.f32 %v959, %v928
        %v961 = vadd.f32 %v960, %v929
        %v962 = vadd.f32 %v961, %v930
        %v963 = vrot.slane %v962, 4
        %v964 = vadd.f32 %v962, %v963
        %v965 = vrot.slane %v964, 2
        %v966 = vadd.f32 %v964, %v965
        %v967 = vrot.slane %v966, 1
        %v968 = vadd.f32 %v966, %v967
        %v969 = vadd.f32 %v931, %v968
        %970 = vst [vmem:[#allocation2] sm:$0x1] %v969
        %p971 = scmp.eq.s32.totalorder %s36, 1
        // Predicated region
        $region65: #{tpu_custom_call.1} parent=43 // pred_check
          %p972 = pneg %p971
        $region66: #{tpu_custom_call.1} parent=43 // pred_check_branch
          %974 = sbr.rel (%p972) target = $region68
        $region67: #{tpu_custom_call.1} parent=43 // pred_region
          %v975 = vld [vmem:[#allocation2] sm:$0x1]
          %v976 = vmul.f32 %v975, 0.002
          %v977 = vpack.c.bf16 %v976, %v976
          %v978 = vld [vmem:[#allocation8] sm:$0xf]
          %v979 = vld [vmem:[#allocation8 + $0x4] sm:$0xf]
          %v980 = vld [vmem:[#allocation8 + $0x8] sm:$0xf]
          %v981 = vld [vmem:[#allocation8 + $0xc] sm:$0xf]
          %v982 = vld [vmem:[#allocation8 + $0x10] sm:$0xf]
          %v983 = vld [vmem:[#allocation8 + $0x14] sm:$0xf]
          %v984 = vld [vmem:[#allocation8 + $0x18] sm:$0xf]
          %v985 = vld [vmem:[#allocation8 + $0x1c] sm:$0xf]
          %v986 = vld [vmem:[#allocation8 + $0x20] sm:$0xf]
          %v987 = vld [vmem:[#allocation8 + $0x24] sm:$0xf]
          %v988 = vld [vmem:[#allocation8 + $0x28] sm:$0xf]
          %v989 = vld [vmem:[#allocation8 + $0x2c] sm:$0xf]
          %v990 = vld [vmem:[#allocation8 + $0x30] sm:$0xf]
          %v991 = vld [vmem:[#allocation8 + $0x34] sm:$0xf]
          %v992 = vld [vmem:[#allocation8 + $0x38] sm:$0xf]
          %v993 = vld [vmem:[#allocation8 + $0x3c] sm:$0xf]
          %v994 = vld [vmem:[%s4] sm:$0x1]
          %v1011 = vunpack.c.l.b16 %v978
          %v1012 = vunpack.c.l.b16 %v979
          %v1013 = vunpack.c.l.b16 %v980
          %v1014 = vunpack.c.l.b16 %v981
          %v1015 = vunpack.c.l.b16 %v982
          %v1016 = vunpack.c.l.b16 %v983
          %v1017 = vunpack.c.l.b16 %v984
          %v1018 = vunpack.c.l.b16 %v985
          %v1019 = vunpack.c.l.b16 %v986
          %v1020 = vunpack.c.l.b16 %v987
          %v1021 = vunpack.c.l.b16 %v988
          %v1022 = vunpack.c.l.b16 %v989
          %v1023 = vunpack.c.l.b16 %v990
          %v1024 = vunpack.c.l.b16 %v991
          %v1025 = vunpack.c.l.b16 %v992
          %v1026 = vunpack.c.l.b16 %v993
          %v1027 = vpack.c.b16 %v1012, %v1011
          %v1028 = vpack.c.b16 %v1014, %v1013
          %v1029 = vpack.c.b16 %v1016, %v1015
          %v1030 = vpack.c.b16 %v1018, %v1017
          %v1031 = vpack.c.b16 %v1020, %v1019
          %v1032 = vpack.c.b16 %v1022, %v1021
          %v1033 = vpack.c.b16 %v1024, %v1023
          %v1034 = vpack.c.b16 %v1026, %v1025
          %1043 = vmatprep.subr.bf16.mxu0 0
          %1044 = vmatpush1.bf16.msra.mxu0 %v1034
          %1045 = vmatprep.subr.bf16.mxu0 0
          %1046 = vmatpush1.bf16.msra.mxu0 %v1033
          %1047 = vmatprep.subr.bf16.mxu0 0
          %1048 = vmatpush1.bf16.msra.mxu0 %v1032
          %1049 = vmatprep.subr.bf16.mxu0 0
          %1050 = vmatpush1.bf16.msra.mxu0 %v1031
          %1051 = vmatprep.subr.bf16.mxu0 0
          %1052 = vmatpush1.bf16.msra.mxu0 %v1030
          %1053 = vmatprep.subr.bf16.mxu0 0
          %1054 = vmatpush1.bf16.msra.mxu0 %v1029
          %1055 = vmatprep.subr.bf16.mxu0 0
          %1056 = vmatpush1.bf16.msra.mxu0 %v1028
          %1057 = vmatprep.subr.bf16.mxu0 0
          %1058 = vmatpush1.bf16.msra.mxu0 %v1027
          %1059 = vmatprep.subr.bf16.mxu0 0
          %1060 = vmatpush2.bf16.msra.mxu0 0
          %1061 = vmatprep.subr.bf16.mxu0 0
          %1062 = vmatpush2.bf16.msra.mxu0 0
          %1063 = vmatprep.subr.bf16.mxu0 0
          %1064 = vmatpush2.bf16.msra.mxu0 0
          %1065 = vmatprep.subr.bf16.mxu0 0
          %1066 = vmatpush2.bf16.msra.mxu0 0
          %1067 = vmatprep.subr.bf16.mxu0 0
          %1068 = vmatpush2.bf16.msra.mxu0 0
          %1069 = vmatprep.subr.bf16.mxu0 0
          %1070 = vmatpush2.bf16.msra.mxu0 0
          %1071 = vmatprep.subr.bf16.mxu0 0
          %1072 = vmatpush2.bf16.msra.mxu0 0
          %1073 = vmatprep.subr.bf16.mxu0 0
          %1074 = vmatpush2.bf16.msra.mxu0 0
          %1075 = vmatprep.mubr.bf16.mxu0 0
          %1076 = vmatmul.mubr.bf16.gmra.mxu0 %v977
          %v1077 = vpop.f32.mrf.mxu0
          %v1078 = vadd.f32 %v994, %v1077
          %v1079 = vpop.f32.mrf.mxu0
          %v1080 = vpop.f32.mrf.mxu0
          %v1081 = vpop.f32.mrf.mxu0
          %1082 = vdwg.mxu0
          %1083 = vst [vmem:[%s386] sm:$0x1] %v1078
          %v1084 = vmul.f32 %v1078, %v1078
          %vm1085 = vcmask 1040384
          %v1086 = vsel %vm1085, %v1084, 0.0
          %1087 = vadd.xlane.f32.xlu0 %v1086
          %v1088 = vpop.xlane.xlu0 %1087
          %v1089 = vmax.f32 %v1088, 1e-16
          %v1090 = vrsqrt.pop %v1089
          %v1091 = vpack.c.bf16 %v1078, %v1078
          %v1092 = vld [vmem:[#allocation9] sm:$0xf]
          %v1093 = vld [vmem:[#allocation9 + $0x4] sm:$0xf]
          %v1094 = vld [vmem:[#allocation9 + $0x8] sm:$0xf]
          %v1095 = vld [vmem:[#allocation9 + $0xc] sm:$0xf]
          %v1096 = vld [vmem:[#allocation9 + $0x10] sm:$0xf]
          %v1097 = vld [vmem:[#allocation9 + $0x14] sm:$0xf]
          %v1098 = vld [vmem:[#allocation9 + $0x18] sm:$0xf]
          %v1099 = vld [vmem:[#allocation9 + $0x1c] sm:$0xf]
          %v1100 = vld [vmem:[#allocation9 + $0x20] sm:$0xf]
          %v1101 = vld [vmem:[#allocation9 + $0x24] sm:$0xf]
          %v1102 = vld [vmem:[#allocation9 + $0x28] sm:$0xf]
          %v1103 = vld [vmem:[#allocation9 + $0x2c] sm:$0xf]
          %v1104 = vld [vmem:[#allocation9 + $0x30] sm:$0xf]
          %v1105 = vld [vmem:[#allocation9 + $0x34] sm:$0xf]
          %v1106 = vld [vmem:[#allocation9 + $0x38] sm:$0xf]
          %v1107 = vld [vmem:[#allocation9 + $0x3c] sm:$0xf]
          %v1124 = vunpack.c.l.b16 %v1092
          %v1125 = vunpack.c.l.b16 %v1093
          %v1126 = vunpack.c.l.b16 %v1094
          %v1127 = vunpack.c.l.b16 %v1095
          %v1128 = vunpack.c.l.b16 %v1096
          %v1129 = vunpack.c.l.b16 %v1097
          %v1130 = vunpack.c.l.b16 %v1098
          %v1131 = vunpack.c.l.b16 %v1099
          %v1132 = vunpack.c.l.b16 %v1100
          %v1133 = vunpack.c.l.b16 %v1101
          %v1134 = vunpack.c.l.b16 %v1102
          %v1135 = vunpack.c.l.b16 %v1103
          %v1136 = vunpack.c.l.b16 %v1104
          %v1137 = vunpack.c.l.b16 %v1105
          %v1138 = vunpack.c.l.b16 %v1106
          %v1139 = vunpack.c.l.b16 %v1107
          %v1140 = vpack.c.b16 %v1125, %v1124
          %v1141 = vpack.c.b16 %v1127, %v1126
          %v1142 = vpack.c.b16 %v1129, %v1128
          %v1143 = vpack.c.b16 %v1131, %v1130
          %v1144 = vpack.c.b16 %v1133, %v1132
          %v1145 = vpack.c.b16 %v1135, %v1134
          %v1146 = vpack.c.b16 %v1137, %v1136
          %v1147 = vpack.c.b16 %v1139, %v1138
          %1156 = vmatprep.subr.bf16.mxu0 0
          %1157 = vmatpush1.bf16.msra.mxu0 %v1147
          %1158 = vmatprep.subr.bf16.mxu0 0
          %1159 = vmatpush1.bf16.msra.mxu0 %v1146
          %1160 = vmatprep.subr.bf16.mxu0 0
          %1161 = vmatpush1.bf16.msra.mxu0 %v1145
          %1162 = vmatprep.subr.bf16.mxu0 0
          %1163 = vmatpush1.bf16.msra.mxu0 %v1144
          %1164 = vmatprep.subr.bf16.mxu0 0
          %1165 = vmatpush1.bf16.msra.mxu0 %v1143
          %1166 = vmatprep.subr.bf16.mxu0 0
          %1167 = vmatpush1.bf16.msra.mxu0 %v1142
          %1168 = vmatprep.subr.bf16.mxu0 0
          %1169 = vmatpush1.bf16.msra.mxu0 %v1141
          %1170 = vmatprep.subr.bf16.mxu0 0
          %1171 = vmatpush1.bf16.msra.mxu0 %v1140
          %1172 = vmatprep.subr.bf16.mxu0 0
          %1173 = vmatpush2.bf16.msra.mxu0 0
          %1174 = vmatprep.subr.bf16.mxu0 0
          %1175 = vmatpush2.bf16.msra.mxu0 0
          %1176 = vmatprep.subr.bf16.mxu0 0
          %1177 = vmatpush2.bf16.msra.mxu0 0
          %1178 = vmatprep.subr.bf16.mxu0 0
          %1179 = vmatpush2.bf16.msra.mxu0 0
          %1180 = vmatprep.subr.bf16.mxu0 0
          %1181 = vmatpush2.bf16.msra.mxu0 0
          %1182 = vmatprep.subr.bf16.mxu0 0
          %1183 = vmatpush2.bf16.msra.mxu0 0
          %1184 = vmatprep.subr.bf16.mxu0 0
          %1185 = vmatpush2.bf16.msra.mxu0 0
          %1186 = vmatprep.subr.bf16.mxu0 0
          %1187 = vmatpush2.bf16.msra.mxu0 0
          %1188 = vmatprep.mubr.bf16.mxu0 0
          %1189 = vmatmul.mubr.bf16.gmra.mxu0 %v1091
          %v1190 = vpop.f32.mrf.mxu0
          %v1191 = vadd.f32 0.0, %v1190
          %v1192 = vpop.f32.mrf.mxu0
          %v1193 = vpop.f32.mrf.mxu0
          %v1194 = vpop.f32.mrf.mxu0
          %1195 = vdwg.mxu0
          %v1196 = vmul.f32 %v1191, %v1090
          %v1197 = vlaneseq
          %v1198 = vand.u32 %v1197, 127
          %vm1199 = vcmp.lt.s32.totalorder %v1198, 5
          %v1200 = vsel %vm1199, %v1196, -inf
          %v1201 = vsel %vm1085, %v1200, -inf
          %1202 = vmax.xlane.f32.xlu0 %v1201
          %v1203 = vpop.xlane.xlu0 %1202
          %v1204 = vsub.f32 %v1200, %v1203
          %v1205 = vmul.f32 %v1204, 1.442695
          %v1206 = vpow.pop %v1205
          %v1207 = vsel %vm1085, %v1206, 0.0
          %1208 = vadd.xlane.f32.xlu0 %v1207
          %v1209 = vpop.xlane.xlu0 %1208
          %v1210 = vrcp.pop %v1209
          %v1211 = vmul.f32 %v1206, %v1210
          %1212 = vst [vmem:[%s392] sm:$0x1] %v1211
          %vm1213 = vcmp.ge.f32.partialorder %v1200, %v1203
          %v1214 = vsel %vm1213, %v1198, 1073741824
          %v1215 = vsel %vm1085, %v1214, 2147483647
          %v1216 = vand.u32 %v1215, 65535
          %v1217 = vshra.s32 %v1215, 16
          %v1218 = vcvt.s32.f32 %v1216
          %v1219 = vcvt.s32.f32 %v1217
          %1220 = vmin.xlane.f32.xlu0 %v1219
          %v1221 = vpop.xlane.xlu0 %1220
          %vm1222 = vcmp.eq.f32.partialorder %v1219, %v1221
          %v1223 = vsel %vm1222, %v1218, inf
          %1224 = vmin.xlane.f32.xlu0 %v1223
          %v1225 = vpop.xlane.xlu0 %1224
          %v1226 = vcvt.f32.s32 %v1225
          %v1227 = vcvt.f32.s32 %v1221
          %v1228 = vshll.u32 %v1227, 16
          %v1229 = vadd.s32 %v1228, %v1226
          %vm1230 = vcmask 0
          %1231 = vst.msk [vmem:[%s401] sm:$0x1] %vm1230, %v1229
        $region68: #{tpu_custom_call.1} parent=43 // pred_fallthru
          _
        %s1232 = sand.u32 %s184, 1
        %s1233 = scalar_lea.sflag [#allocation5], %s1232
        %s1234 = sand.u32 %s184, 1
        %s1235 = scalar_lea.vmem [#allocation11], %s1234
        %s1236 = sand.u32 %s210, 1
        %s1237 = scalar_lea.sflag [#allocation13], %s1236
        %s1238 = sand.u32 %s210, 1
        %s1239 = scalar_lea.vmem [#allocation12], %s1238
        %p1240 = scmp.lt.s32.totalorder %s35, 1
        %s1241 = scalar_select %p1240, %s35, 1
        %s1242 = scalar_lea.vmem %s8, %s1241
        // Predicated region
        $region69: #{tpu_custom_call.1} parent=43 // pred_check
          %p1243 = pneg %p194
        $region70: #{tpu_custom_call.1} parent=43 // pred_check_branch
          %1245 = sbr.rel (%p1243) target = $region72
        $region71: #{tpu_custom_call.1} parent=43 // pred_region
          %s1247 = ssub.s32 16, 16
          %1248 = vsyncadd %s1233, %s1247
          %s1249 = smul.addr %s35, 16
          %s1250 = scalar_lea.hbm %s6, %s1249
          %s1252 = sshll.u32 %s1235, 4
          %s1253 = int_to_ptr.vmem [resolvable:$true] %s1252
          %1255 = dma.vmem_to_hbm [thread:$0]  %s1253, 16, %s1250, %s1233
        $region72: #{tpu_custom_call.1} parent=43 // pred_fallthru
          _
        // Predicated region
        $region73: #{tpu_custom_call.1} parent=43 // pred_check
          %p1256 = pneg %p220
        $region74: #{tpu_custom_call.1} parent=43 // pred_check_branch
          %1258 = sbr.rel (%p1256) target = $region76
        $region75: #{tpu_custom_call.1} parent=43 // pred_region
          %s1260 = ssub.s32 16, 16
          %1261 = vsyncadd %s1237, %s1260
          %s1262 = smul.addr %s35, 16
          %s1263 = scalar_lea.hbm %s7, %s1262
          %s1265 = sshll.u32 %s1239, 4
          %s1266 = int_to_ptr.vmem [resolvable:$true] %s1265
          %1268 = dma.vmem_to_hbm [thread:$0]  %s1266, 16, %s1263, %s1237
        $region76: #{tpu_custom_call.1} parent=43 // pred_fallthru
          _
        // Predicated region
        $region77: #{tpu_custom_call.1} parent=43 // pred_check
          %p1269 = pneg %p246
        $region78: #{tpu_custom_call.1} parent=43 // pred_check_branch
          %1271 = sbr.rel (%p1269) target = $region80
        $region79: #{tpu_custom_call.1} parent=43 // pred_region
          _
        $region80: #{tpu_custom_call.1} parent=43 // pred_fallthru
          _
      $region44: #{tpu_custom_call.1} parent=5 // pred_fallthru
        _
      %p1272 = scmp.le.s32.totalorder 2, %s26
      // Predicated region
      $region81: #{tpu_custom_call.1} parent=5 // pred_check
        %p1273 = pneg %p1272
      $region82: #{tpu_custom_call.1} parent=5 // pred_check_branch
        %1275 = sbr.rel (%p1273) target = $region84
      $region83: #{tpu_custom_call.1} parent=5 // pred_region
        %s1276 = ssub.s32 %s26, 2
        // Predicated region
        $region85: #{tpu_custom_call.1} parent=83 // pred_check
          %p1277 = pneg %p200
        $region86: #{tpu_custom_call.1} parent=83 // pred_check_branch
          %1279 = sbr.rel (%p1277) target = $region88
        $region87: #{tpu_custom_call.1} parent=83 // pred_region
          %s1280 = sand.u32 %s185, 1
          %s1281 = scalar_lea.sflag [#allocation5], %s1280
          %s1282 = sand.u32 %s185, 1
          %s1283 = scalar_lea.vmem [#allocation11], %s1282
          %1284 = dma.done %s1281, 16
        $region88: #{tpu_custom_call.1} parent=83 // pred_fallthru
          _
        // Predicated region
        $region89: #{tpu_custom_call.1} parent=83 // pred_check
          %p1285 = pneg %p226
        $region90: #{tpu_custom_call.1} parent=83 // pred_check_branch
          %1287 = sbr.rel (%p1285) target = $region92
        $region91: #{tpu_custom_call.1} parent=83 // pred_region
          %s1288 = sand.u32 %s211, 1
          %s1289 = scalar_lea.sflag [#allocation13], %s1288
          %s1290 = sand.u32 %s211, 1
          %s1291 = scalar_lea.vmem [#allocation12], %s1290
          %1292 = dma.done %s1289, 16
        $region92: #{tpu_custom_call.1} parent=83 // pred_fallthru
          _
        // Predicated region
        $region93: #{tpu_custom_call.1} parent=83 // pred_check
          %p1293 = pneg %p252
        $region94: #{tpu_custom_call.1} parent=83 // pred_check_branch
          %1295 = sbr.rel (%p1293) target = $region96
        $region95: #{tpu_custom_call.1} parent=83 // pred_region
          %p1296 = scmp.lt.s32.totalorder %s37, 1
          %s1297 = scalar_select %p1296, %s37, 1
          %s1298 = scalar_lea.vmem %s8, %s1297
        $region96: #{tpu_custom_call.1} parent=83 // pred_fallthru
          _
      $region84: #{tpu_custom_call.1} parent=5 // pred_fallthru
        _
    $region6: #{tpu_custom_call.1} parent=1 // loop_footer
      %s30 = sadd.s32 1, %s26
    $region7: #{tpu_custom_call.1} parent=1 // loop_footer_branch
      %25 = sbr.rel target = $region3
    $region8: #{tpu_custom_call.1} parent=1 // loop_exit
      _
    %1299 = vsyncpa [#allocation4], 1
    %s1300 = scalar_lea.sflag [#allocation4], 1
    %1301 = vsyncpa %s1300, 1
    %1302 = vsyncpa [#allocation7], 1
    %1303 = vsyncpa [#allocation10], 1
    %1304 = vsyncpa [#allocation5], 1
    %s1305 = scalar_lea.sflag [#allocation5], 1
    %1306 = vsyncpa %s1305, 1
    %1307 = vsyncpa [#allocation13], 1
    %s1308 = scalar_lea.sflag [#allocation13], 1
    %1309 = vsyncpa %s1308, 1

</llo_original>
